<compile_context>
chip_gen: v5e
topology: v5e:2x2
jax: 0.10.0
libtpu: 0.0.40
codegen_flags: <defaults>
</compile_context>

<pallas_src>
import functools

import jax
import jax.numpy as jnp
from jax.experimental import pallas as pl
from jax.experimental.pallas import tpu as pltpu

IN_FEATURES = 28 * 28   # 784
HIDDEN = 512
OUT_FEATURES = 10
OUT_PADDED = 128        # lane-dense final width; columns 10..127 are zero
DEFAULT_TILE_B = 1024


def mlp_kernel(x_ref, w1_ref, b1_ref, w2_ref, b2_ref, w3_ref, b3_ref, o_ref):
    # bf16 MXU matmuls with f32 accumulation; bias + ReLU in f32 on the VPU,
    # re-cast to bf16 in one fused epilogue per layer.
    h1 = jnp.dot(x_ref[...], w1_ref[...], preferred_element_type=jnp.float32)
    h1 = jnp.maximum(h1 + b1_ref[...], 0.0).astype(jnp.bfloat16)
    h2 = jnp.dot(h1, w2_ref[...], preferred_element_type=jnp.float32)
    h2 = jnp.maximum(h2 + b2_ref[...], 0.0).astype(jnp.bfloat16)
    out = jnp.dot(h2, w3_ref[...], preferred_element_type=jnp.float32) + b3_ref[...]
    o_ref[...] = out.astype(jnp.bfloat16)   # bf16 writeback (lane-dense 128 wide)


def init_params(key):
    """torch.nn.Linear default init: U(-1/sqrt(fan_in), +1/sqrt(fan_in)).

    Weights are stored (in, out) and cast once to bf16; the last layer is
    zero-padded from 10 to 128 output columns so the kernel output is
    lane-dense. Biases stay f32, shaped (1, N) for in-kernel broadcasting.
    """
    dims = [(IN_FEATURES, HIDDEN), (HIDDEN, HIDDEN), (HIDDEN, OUT_FEATURES)]
    params = []
    for idx, (fan_in, fan_out) in enumerate(dims):
        key, kw, kb = jax.random.split(key, 3)
        bound = 1.0 / float(fan_in) ** 0.5
        w = jax.random.uniform(kw, (fan_in, fan_out), jnp.float32, -bound, bound)
        b = jax.random.uniform(kb, (fan_out,), jnp.float32, -bound, bound)
        if idx == 2:  # pad final layer to lane-dense width (zeros are free)
            w = jnp.pad(w, ((0, 0), (0, OUT_PADDED - fan_out)))
            b = jnp.pad(b, ((0, OUT_PADDED - fan_out),))
        params += [w.astype(jnp.bfloat16), b.reshape(1, -1).astype(jnp.float32)]
    return tuple(params)


def _choose_tile(B, tile_b):
    """Pick (tb, Bp): minimize batch padding and keep >=2 grid steps when
    B >= 16 so the 'parallel' batch axis can use both v7x TensorCores."""
    n_steps = -(-B // tile_b)                 # cdiv
    if n_steps == 1 and B >= 16:
        n_steps = 2
    tb = -(-B // n_steps)
    tb = ((tb + 7) // 8) * 8                  # sublane multiple of 8
    n_steps = -(-B // tb)
    return tb, tb * n_steps


def _resident(shape):
    # Constant-index blocks: DMA'd once, single-buffered (saves VMEM).
    return pl.BlockSpec(shape, lambda i: (0, 0), pipeline_mode=pl.Buffered(1))


@functools.partial(jax.jit, static_argnames=("tile_b",))
def neural_network_forward(x, params, tile_b=DEFAULT_TILE_B):
    """Equivalent of NeuralNetwork.forward: flatten -> Linear/ReLU x2 -> Linear."""
    w1, b1, w2, b2, w3, b3 = params
    B = x.shape[0]
    # Flatten + bf16 at the source (fused under jit) -> halves streamed x bytes.
    xf = x.reshape(B, -1).astype(jnp.bfloat16)

    tb, Bp = _choose_tile(B, tile_b)
    if Bp != B:  # pad only when needed
        xf = jnp.pad(xf, ((0, Bp - B), (0, 0)))

    flops = 2 * Bp * (IN_FEATURES * HIDDEN + HIDDEN * HIDDEN + HIDDEN * OUT_PADDED)
    bytes_accessed = (Bp * IN_FEATURES * 2                      # x (bf16)
                      + (w1.size + w2.size + w3.size) * 2       # weights (bf16)
                      + (b1.size + b2.size + b3.size) * 4       # biases (f32)
                      + Bp * OUT_PADDED * 2)                    # out (bf16)

    out = pl.pallas_call(
        mlp_kernel,
        out_shape=jax.ShapeDtypeStruct((Bp, OUT_PADDED), jnp.bfloat16),
        grid_spec=pltpu.PrefetchScalarGridSpec(
            num_scalar_prefetch=0,
            grid=(Bp // tb,),
            in_specs=[
                pl.BlockSpec((tb, IN_FEATURES), lambda i: (i, 0)),  # x: streamed, double-buffered
                _resident((IN_FEATURES, HIDDEN)),                   # w1 \
                _resident((1, HIDDEN)),                             # b1  } resident in VMEM,
                _resident((HIDDEN, HIDDEN)),                        # w2  } fetched once,
                _resident((1, HIDDEN)),                             # b2  } single-buffered
                _resident((HIDDEN, OUT_PADDED)),                    # w3  }
                _resident((1, OUT_PADDED)),                         # b3 /
            ],
            out_specs=pl.BlockSpec((tb, OUT_PADDED), lambda i: (i, 0)),
        ),
        compiler_params=pltpu.CompilerParams(
            dimension_semantics=("parallel",),      # v7x: shard batch blocks over 2 TCs
            vmem_limit_bytes=32 << 20,              # headroom for tb=1024 on all gens
        ),
        cost_estimate=pl.CostEstimate(flops=flops, transcendentals=0,
                                      bytes_accessed=bytes_accessed),
    )(xf, w1, b1, w2, b2, w3, b3)

    # Slice away batch/lane padding; return f32 logits for drop-in parity.
    return out[:B, :OUT_FEATURES].astype(jnp.float32)


if __name__ == "__main__":
    key = jax.random.PRNGKey(0)
    kx, kp = jax.random.split(key)
    # Small MNIST-like input: batch=2, NCHW (2, 1, 28, 28).
    x = jax.random.normal(kx, (2, 1, 28, 28), jnp.float32)
    params = init_params(kp)

    logits = neural_network_forward(x, params)
    jax.block_until_ready(logits)
    assert logits.shape == (2, 10), logits.shape

    # Reference in plain JAX mirroring the kernel's precision policy
    # (bf16 matmul operands, f32 accumulation, f32 bias+ReLU, bf16 activations).
    w1, b1, w2, b2, w3, b3 = params
    xr = x.reshape(2, -1).astype(jnp.bfloat16)
    h = jnp.maximum(jnp.dot(xr, w1, preferred_element_type=jnp.float32) + b1,
                    0.0).astype(jnp.bfloat16)
    h = jnp.maximum(jnp.dot(h, w2, preferred_element_type=jnp.float32) + b2,
                    0.0).astype(jnp.bfloat16)
    ref = (jnp.dot(h, w3, preferred_element_type=jnp.float32) + b3)[:, :OUT_FEATURES]
    ref = ref.astype(jnp.float32)
    err = float(jnp.max(jnp.abs(logits - ref)))
    assert jnp.allclose(logits, ref, atol=2e-2, rtol=2e-2), err

    print("KERNEL_OK")
</pallas_src>

<mosaic_0001>
module attributes {stable_mosaic.version = 11 : i64} {
  func.func @mlp_kernel(%arg0: i32, %arg1: memref<8x784xbf16, #tpu.memory_space<vmem>>, %arg2: memref<784x512xbf16, #tpu.memory_space<vmem>>, %arg3: memref<1x512xf32, #tpu.memory_space<vmem>>, %arg4: memref<512x512xbf16, #tpu.memory_space<vmem>>, %arg5: memref<1x512xf32, #tpu.memory_space<vmem>>, %arg6: memref<512x128xbf16, #tpu.memory_space<vmem>>, %arg7: memref<1x128xf32, #tpu.memory_space<vmem>>, %arg8: memref<8x128xbf16, #tpu.memory_space<vmem>>) attributes {dimension_semantics = [#tpu.dimension_semantics<parallel>], iteration_bounds = array<i64: 1>, scalar_prefetch = 0 : i64, scratch_operands = 0 : i64, tpu.core_type = #tpu.core_type<tc>, window_params = [{transform_indices = @transform_0, window_bounds = array<i64: 8, 784>}, {pipeline_mode = #tpu.pipeline_mode<synchronous>, transform_indices = @transform_1, window_bounds = array<i64: 784, 512>}, {pipeline_mode = #tpu.pipeline_mode<synchronous>, transform_indices = @transform_2, window_bounds = array<i64: 1, 512>}, {pipeline_mode = #tpu.pipeline_mode<synchronous>, transform_indices = @transform_3, window_bounds = array<i64: 512, 512>}, {pipeline_mode = #tpu.pipeline_mode<synchronous>, transform_indices = @transform_4, window_bounds = array<i64: 1, 512>}, {pipeline_mode = #tpu.pipeline_mode<synchronous>, transform_indices = @transform_5, window_bounds = array<i64: 512, 128>}, {pipeline_mode = #tpu.pipeline_mode<synchronous>, transform_indices = @transform_6, window_bounds = array<i64: 1, 128>}, {transform_indices = @transform_7, window_bounds = array<i64: 8, 128>}]} {
    %c0 = arith.constant 0 : index
    %c0_0 = arith.constant 0 : index
    %0 = vector.load %arg1[%c0, %c0_0] : memref<8x784xbf16, #tpu.memory_space<vmem>>, vector<8x784xbf16>
    %c0_1 = arith.constant 0 : index
    %c0_2 = arith.constant 0 : index
    %1 = vector.load %arg2[%c0_1, %c0_2] : memref<784x512xbf16, #tpu.memory_space<vmem>>, vector<784x512xbf16>
    %cst = arith.constant dense<0.000000e+00> : vector<8x512xf32>
    %2 = tpu.matmul %0, %1, %cst {dimension_numbers = #tpu.dot_dimension_numbers<[1], [0], [0], [1], [0, 0, 1, 1], [], []>} : vector<8x784xbf16>, vector<784x512xbf16>, vector<8x512xf32> -> vector<8x512xf32>
    %c0_3 = arith.constant 0 : index
    %c0_4 = arith.constant 0 : index
    %3 = vector.load %arg3[%c0_3, %c0_4] : memref<1x512xf32, #tpu.memory_space<vmem>>, vector<1x512xf32>
    %4 = vector.broadcast %3 : vector<1x512xf32> to vector<8x512xf32>
    %5 = arith.addf %2, %4 : vector<8x512xf32>
    %cst_5 = arith.constant 0.000000e+00 : f32
    %6 = vector.broadcast %cst_5 : f32 to vector<8x512xf32>
    %7 = arith.maximumf %5, %6 : vector<8x512xf32>
    %8 = arith.truncf %7 : vector<8x512xf32> to vector<8x512xbf16>
    %c0_6 = arith.constant 0 : index
    %c0_7 = arith.constant 0 : index
    %9 = vector.load %arg4[%c0_6, %c0_7] : memref<512x512xbf16, #tpu.memory_space<vmem>>, vector<512x512xbf16>
    %cst_8 = arith.constant dense<0.000000e+00> : vector<8x512xf32>
    %10 = tpu.matmul %8, %9, %cst_8 {dimension_numbers = #tpu.dot_dimension_numbers<[1], [0], [0], [1], [0, 0, 1, 1], [], []>} : vector<8x512xbf16>, vector<512x512xbf16>, vector<8x512xf32> -> vector<8x512xf32>
    %c0_9 = arith.constant 0 : index
    %c0_10 = arith.constant 0 : index
    %11 = vector.load %arg5[%c0_9, %c0_10] : memref<1x512xf32, #tpu.memory_space<vmem>>, vector<1x512xf32>
    %12 = vector.broadcast %11 : vector<1x512xf32> to vector<8x512xf32>
    %13 = arith.addf %10, %12 : vector<8x512xf32>
    %cst_11 = arith.constant 0.000000e+00 : f32
    %14 = vector.broadcast %cst_11 : f32 to vector<8x512xf32>
    %15 = arith.maximumf %13, %14 : vector<8x512xf32>
    %16 = arith.truncf %15 : vector<8x512xf32> to vector<8x512xbf16>
    %c0_12 = arith.constant 0 : index
    %c0_13 = arith.constant 0 : index
    %17 = vector.load %arg6[%c0_12, %c0_13] : memref<512x128xbf16, #tpu.memory_space<vmem>>, vector<512x128xbf16>
    %cst_14 = arith.constant dense<0.000000e+00> : vector<8x128xf32>
    %18 = tpu.matmul %16, %17, %cst_14 {dimension_numbers = #tpu.dot_dimension_numbers<[1], [0], [0], [1], [0, 0, 1, 1], [], []>} : vector<8x512xbf16>, vector<512x128xbf16>, vector<8x128xf32> -> vector<8x128xf32>
    %c0_15 = arith.constant 0 : index
    %c0_16 = arith.constant 0 : index
    %19 = vector.load %arg7[%c0_15, %c0_16] : memref<1x128xf32, #tpu.memory_space<vmem>>, vector<1x128xf32>
    %20 = vector.broadcast %19 : vector<1x128xf32> to vector<8x128xf32>
    %21 = arith.addf %18, %20 : vector<8x128xf32>
    %22 = arith.truncf %21 : vector<8x128xf32> to vector<8x128xbf16>
    %c0_17 = arith.constant 0 : index
    %c0_18 = arith.constant 0 : index
    %23 = vector.load %arg8[%c0_17, %c0_18] : memref<8x128xbf16, #tpu.memory_space<vmem>>, vector<8x128xbf16>
    tpu.vector_store %arg8[%c0_17, %c0_18], %22 {strides = array<i32>} : memref<8x128xbf16, #tpu.memory_space<vmem>>, vector<8x128xbf16>,
    return
  }
  func.func @transform_0(%arg0: i32) -> (i32, i32) {
    %c0_i32 = arith.constant 0 : i32
    %c0_i32_0 = arith.constant 0 : i32
    return %arg0, %c0_i32 : i32, i32
  }
  func.func @transform_1(%arg0: i32) -> (i32, i32) {
    %c0_i32 = arith.constant 0 : i32
    %c0_i32_0 = arith.constant 0 : i32
    %c0_i32_1 = arith.constant 0 : i32
    return %c0_i32, %c0_i32_0 : i32, i32
  }
  func.func @transform_2(%arg0: i32) -> (i32, i32) {
    %c0_i32 = arith.constant 0 : i32
    %c0_i32_0 = arith.constant 0 : i32
    %c0_i32_1 = arith.constant 0 : i32
    return %c0_i32, %c0_i32_0 : i32, i32
  }
  func.func @transform_3(%arg0: i32) -> (i32, i32) {
    %c0_i32 = arith.constant 0 : i32
    %c0_i32_0 = arith.constant 0 : i32
    %c0_i32_1 = arith.constant 0 : i32
    return %c0_i32, %c0_i32_0 : i32, i32
  }
  func.func @transform_4(%arg0: i32) -> (i32, i32) {
    %c0_i32 = arith.constant 0 : i32
    %c0_i32_0 = arith.constant 0 : i32
    %c0_i32_1 = arith.constant 0 : i32
    return %c0_i32, %c0_i32_0 : i32, i32
  }
  func.func @transform_5(%arg0: i32) -> (i32, i32) {
    %c0_i32 = arith.constant 0 : i32
    %c0_i32_0 = arith.constant 0 : i32
    %c0_i32_1 = arith.constant 0 : i32
    return %c0_i32, %c0_i32_0 : i32, i32
  }
  func.func @transform_6(%arg0: i32) -> (i32, i32) {
    %c0_i32 = arith.constant 0 : i32
    %c0_i32_0 = arith.constant 0 : i32
    %c0_i32_1 = arith.constant 0 : i32
    return %c0_i32, %c0_i32_0 : i32, i32
  }
  func.func @transform_7(%arg0: i32) -> (i32, i32) {
    %c0_i32 = arith.constant 0 : i32
    %c0_i32_0 = arith.constant 0 : i32
    return %arg0, %c0_i32 : i32, i32
  }
}

</mosaic_0001>

<llo_original>
// kernel: neural_network_forward.1
$region0: #{neural_network_forward.1}
  #allocation0 [shape = 'u32[]', space=smem, size = 0x4, offset = 0x4, fixed_abs, tag = 'smem constant byte address 0x4 - core index']
  #allocation1 [shape = 'u32[72,128]{1,0:T(1,128)}', space=vmem, size = 0x9000, scoped, tag = 'internal scratch']
  %s0 = inlined_call_operand.vmem [shape: bf16[8,784], index: 0, kind: input, shape index: {}]
  %s1 = inlined_call_operand.hbm [shape: bf16[784,512], index: 1, kind: input, shape index: {}]
  %s2 = inlined_call_operand.vmem [shape: f32[1,512], index: 2, kind: input, shape index: {}]
  %s3 = inlined_call_operand.hbm [shape: bf16[512,512], index: 3, kind: input, shape index: {}]
  %s4 = inlined_call_operand.vmem [shape: f32[1,512], index: 4, kind: input, shape index: {}]
  %s5 = inlined_call_operand.hbm [shape: bf16[512,128], index: 5, kind: input, shape index: {}]
  %s6 = inlined_call_operand.vmem [shape: f32[1,128], index: 6, kind: input, shape index: {}]
  %s7 = inlined_call_operand.vmem [shape: bf16[8,128], index: 7, kind: output, shape index: {}]
  %s8 = sld [smem:[#allocation0]]
  $region50: #{neural_network_forward.1} parent=0
    _
  %s10 = ssub.s32 1, %s8
  %s11 = scalar_select 0, %s10, %s8
  $region1: #{neural_network_forward.1} parent=0
    #allocation2 [shape = 'u8[802816]{0}', space=vmem, size = 0xc4000, scoped, tag = 'input window, operand 1, single buffered']
    #allocation3 [shape = 's32[1]{0}', space=sflag, size = 0x4, scoped, tag = 'scoped memory for neural_network_forward.1']
    #allocation4 [shape = 'u8[524288]{0}', space=vmem, size = 0x80000, scoped, tag = 'input window, operand 3, single buffered']
    #allocation5 [shape = 's32[1]{0}', space=sflag, size = 0x4, scoped, tag = 'scoped memory for neural_network_forward.1']
    #allocation6 [shape = 'u8[131072]{0}', space=vmem, size = 0x20000, scoped, tag = 'input window, operand 5, single buffered']
    %12 = vsyncpa [#allocation3], 0
    %13 = vsyncpa [#allocation5], 0
    // Predicated region
    $region2: #{neural_network_forward.1} parent=1 // pred_check
      _
    $region3: #{neural_network_forward.1} parent=1 // pred_check_branch
      %15 = sbr.rel (0) target = $region5
    $region4: #{neural_network_forward.1} parent=1 // pred_region
      _
    $region5: #{neural_network_forward.1} parent=1 // pred_fallthru
      _
    // Predicated region
    $region6: #{neural_network_forward.1} parent=1 // pred_check
      _
    $region7: #{neural_network_forward.1} parent=1 // pred_check_branch
      %17 = sbr.rel (0) target = $region9
    $region8: #{neural_network_forward.1} parent=1 // pred_region
      %19 = vsyncadd [#allocation3], 0
      %s20 = sshll.u32 %s1, 4
      %s21 = int_to_ptr.hbm [resolvable:$true] %s20
      %s22 = sshll.u32 [#allocation2], 4
      %s23 = int_to_ptr.vmem [resolvable:$true] %s22
      %28 = dma.hbm_to_vmem [thread:$0]  %s21, 25088, %s23, [#allocation3], 256, 256, 16
    $region9: #{neural_network_forward.1} parent=1 // pred_fallthru
      _
    // Predicated region
    $region10: #{neural_network_forward.1} parent=1 // pred_check
      _
    $region11: #{neural_network_forward.1} parent=1 // pred_check_branch
      %30 = sbr.rel (0) target = $region13
    $region12: #{neural_network_forward.1} parent=1 // pred_region
      _
    $region13: #{neural_network_forward.1} parent=1 // pred_fallthru
      _
    // Predicated region
    $region14: #{neural_network_forward.1} parent=1 // pred_check
      _
    $region15: #{neural_network_forward.1} parent=1 // pred_check_branch
      %32 = sbr.rel (0) target = $region17
    $region16: #{neural_network_forward.1} parent=1 // pred_region
      %34 = vsyncadd [#allocation5], 0
      %s35 = sshll.u32 %s3, 4
      %s36 = int_to_ptr.hbm [resolvable:$true] %s35
      %s37 = sshll.u32 [#allocation4], 4
      %s38 = int_to_ptr.vmem [resolvable:$true] %s37
      %43 = dma.hbm_to_vmem [thread:$0]  %s36, 16384, %s38, [#allocation5], 256, 256, 16
    $region17: #{neural_network_forward.1} parent=1 // pred_fallthru
      _
    // Predicated region
    $region18: #{neural_network_forward.1} parent=1 // pred_check
      _
    $region19: #{neural_network_forward.1} parent=1 // pred_check_branch
      %45 = sbr.rel (0) target = $region21
    $region20: #{neural_network_forward.1} parent=1 // pred_region
      _
    $region21: #{neural_network_forward.1} parent=1 // pred_fallthru
      _
    // Predicated region
    $region22: #{neural_network_forward.1} parent=1 // pred_check
      _
    $region23: #{neural_network_forward.1} parent=1 // pred_check_branch
      %47 = sbr.rel (0) target = $region25
    $region24: #{neural_network_forward.1} parent=1 // pred_region
      %49 = vsyncadd [#allocation5], 0
      %s50 = sshll.u32 %s5, 4
      %s51 = int_to_ptr.hbm [resolvable:$true] %s50
      %s52 = sshll.u32 [#allocation6], 4
      %s53 = int_to_ptr.vmem [resolvable:$true] %s52
      %58 = dma.hbm_to_vmem [thread:$0]  %s51, 4096, %s53, [#allocation5], 64, 64, 4
    $region25: #{neural_network_forward.1} parent=1 // pred_fallthru
      _
    // Predicated region
    $region26: #{neural_network_forward.1} parent=1 // pred_check
      _
    $region27: #{neural_network_forward.1} parent=1 // pred_check_branch
      %60 = sbr.rel (0) target = $region29
    $region28: #{neural_network_forward.1} parent=1 // pred_region
      _
    $region29: #{neural_network_forward.1} parent=1 // pred_fallthru
      _
    // Predicated region
    $region30: #{neural_network_forward.1} parent=1 // pred_check
      _
    $region31: #{neural_network_forward.1} parent=1 // pred_check_branch
      %62 = sbr.rel (0) target = $region33
    $region32: #{neural_network_forward.1} parent=1 // pred_region
      %64 = dma.done [#allocation3], 25088
    $region33: #{neural_network_forward.1} parent=1 // pred_fallthru
      _
    // Predicated region
    $region34: #{neural_network_forward.1} parent=1 // pred_check
      _
    $region35: #{neural_network_forward.1} parent=1 // pred_check_branch
      %66 = sbr.rel (0) target = $region37
    $region36: #{neural_network_forward.1} parent=1 // pred_region
      %68 = dma.done [#allocation5], 16384
    $region37: #{neural_network_forward.1} parent=1 // pred_fallthru
      _
    // Predicated region
    $region38: #{neural_network_forward.1} parent=1 // pred_check
      _
    $region39: #{neural_network_forward.1} parent=1 // pred_check_branch
      %70 = sbr.rel (0) target = $region41
    $region40: #{neural_network_forward.1} parent=1 // pred_region
      %72 = dma.done [#allocation5], 4096
    $region41: #{neural_network_forward.1} parent=1 // pred_fallthru
      _
    %v74 = vld [vmem:[%s0] sm:$0xff]
    %v75 = vld [vmem:[%s0 + $0x8] sm:$0xff]
    %v76 = vld [vmem:[%s0 + $0x10] sm:$0xff]
    %v77 = vld [vmem:[%s0 + $0x18] sm:$0xf]
    %v78 = vld [vmem:[#allocation2] sm:$0xff]
    %v79 = vld [vmem:[#allocation2 + $0x8] sm:$0xff]
    %v80 = vld [vmem:[#allocation2 + $0x10] sm:$0xff]
    %v81 = vld [vmem:[#allocation2 + $0x18] sm:$0xff]
    %v82 = vld [vmem:[#allocation2 + $0x20] sm:$0xff]
    %v83 = vld [vmem:[#allocation2 + $0x28] sm:$0xff]
    %v84 = vld [vmem:[#allocation2 + $0x30] sm:$0xff]
    %v85 = vld [vmem:[#allocation2 + $0x38] sm:$0xff]
    %v86 = vld [vmem:[#allocation2 + $0x40] sm:$0xff]
    %v87 = vld [vmem:[#allocation2 + $0x48] sm:$0xff]
    %v88 = vld [vmem:[#allocation2 + $0x50] sm:$0xff]
    %v89 = vld [vmem:[#allocation2 + $0x58] sm:$0xff]
    %v90 = vld [vmem:[#allocation2 + $0x60] sm:$0xff]
    %v91 = vld [vmem:[#allocation2 + $0x68] sm:$0xff]
    %v92 = vld [vmem:[#allocation2 + $0x70] sm:$0xff]
    %v93 = vld [vmem:[#allocation2 + $0x78] sm:$0xff]
    %v94 = vld [vmem:[#allocation2 + $0x80] sm:$0xff]
    %v95 = vld [vmem:[#allocation2 + $0x88] sm:$0xff]
    %v96 = vld [vmem:[#allocation2 + $0x90] sm:$0xff]
    %v97 = vld [vmem:[#allocation2 + $0x98] sm:$0xff]
    %v98 = vld [vmem:[#allocation2 + $0xa0] sm:$0xff]
    %v99 = vld [vmem:[#allocation2 + $0xa8] sm:$0xff]
    %v100 = vld [vmem:[#allocation2 + $0xb0] sm:$0xff]
    %v101 = vld [vmem:[#allocation2 + $0xb8] sm:$0xff]
    %v102 = vld [vmem:[#allocation2 + $0xc0] sm:$0xff]
    %v103 = vld [vmem:[#allocation2 + $0xc8] sm:$0xff]
    %v104 = vld [vmem:[#allocation2 + $0xd0] sm:$0xff]
    %v105 = vld [vmem:[#allocation2 + $0xd8] sm:$0xff]
    %v106 = vld [vmem:[#allocation2 + $0xe0] sm:$0xff]
    %v107 = vld [vmem:[#allocation2 + $0xe8] sm:$0xff]
    %v108 = vld [vmem:[#allocation2 + $0xf0] sm:$0xff]
    %v109 = vld [vmem:[#allocation2 + $0xf8] sm:$0xff]
    %v110 = vld [vmem:[#allocation2 + $0x100] sm:$0xff]
    %v111 = vld [vmem:[#allocation2 + $0x108] sm:$0xff]
    %v112 = vld [vmem:[#allocation2 + $0x110] sm:$0xff]
    %v113 = vld [vmem:[#allocation2 + $0x118] sm:$0xff]
    %v114 = vld [vmem:[#allocation2 + $0x120] sm:$0xff]
    %v115 = vld [vmem:[#allocation2 + $0x128] sm:$0xff]
    %v116 = vld [vmem:[#allocation2 + $0x130] sm:$0xff]
    %v117 = vld [vmem:[#allocation2 + $0x138] sm:$0xff]
    %v118 = vld [vmem:[#allocation2 + $0x140] sm:$0xff]
    %v119 = vld [vmem:[#allocation2 + $0x148] sm:$0xff]
    %v120 = vld [vmem:[#allocation2 + $0x150] sm:$0xff]
    %v121 = vld [vmem:[#allocation2 + $0x158] sm:$0xff]
    %v122 = vld [vmem:[#allocation2 + $0x160] sm:$0xff]
    %v123 = vld [vmem:[#allocation2 + $0x168] sm:$0xff]
    %v124 = vld [vmem:[#allocation2 + $0x170] sm:$0xff]
    %v125 = vld [vmem:[#allocation2 + $0x178] sm:$0xff]
    %v126 = vld [vmem:[#allocation2 + $0x180] sm:$0xff]
    %v127 = vld [vmem:[#allocation2 + $0x188] sm:$0xff]
    %v128 = vld [vmem:[#allocation2 + $0x190] sm:$0xff]
    %v129 = vld [vmem:[#allocation2 + $0x198] sm:$0xff]
    %v130 = vld [vmem:[#allocation2 + $0x1a0] sm:$0xff]
    %v131 = vld [vmem:[#allocation2 + $0x1a8] sm:$0xff]
    %v132 = vld [vmem:[#allocation2 + $0x1b0] sm:$0xff]
    %v133 = vld [vmem:[#allocation2 + $0x1b8] sm:$0xff]
    %v134 = vld [vmem:[#allocation2 + $0x1c0] sm:$0xff]
    %v135 = vld [vmem:[#allocation2 + $0x1c8] sm:$0xff]
    %v136 = vld [vmem:[#allocation2 + $0x1d0] sm:$0xff]
    %v137 = vld [vmem:[#allocation2 + $0x1d8] sm:$0xff]
    %v138 = vld [vmem:[#allocation2 + $0x1e0] sm:$0xff]
    %v139 = vld [vmem:[#allocation2 + $0x1e8] sm:$0xff]
    %v140 = vld [vmem:[#allocation2 + $0x1f0] sm:$0xff]
    %v141 = vld [vmem:[#allocation2 + $0x1f8] sm:$0xff]
    %v142 = vld [vmem:[#allocation2 + $0x200] sm:$0xff]
    %v143 = vld [vmem:[#allocation2 + $0x208] sm:$0xff]
    %v144 = vld [vmem:[#allocation2 + $0x210] sm:$0xff]
    %v145 = vld [vmem:[#allocation2 + $0x218] sm:$0xff]
    %v146 = vld [vmem:[#allocation2 + $0x220] sm:$0xff]
    %v147 = vld [vmem:[#allocation2 + $0x228] sm:$0xff]
    %v148 = vld [vmem:[#allocation2 + $0x230] sm:$0xff]
    %v149 = vld [vmem:[#allocation2 + $0x238] sm:$0xff]
    %v150 = vld [vmem:[#allocation2 + $0x240] sm:$0xff]
    %v151 = vld [vmem:[#allocation2 + $0x248] sm:$0xff]
    %v152 = vld [vmem:[#allocation2 + $0x250] sm:$0xff]
    %v153 = vld [vmem:[#allocation2 + $0x258] sm:$0xff]
    %v154 = vld [vmem:[#allocation2 + $0x260] sm:$0xff]
    %v155 = vld [vmem:[#allocation2 + $0x268] sm:$0xff]
    %v156 = vld [vmem:[#allocation2 + $0x270] sm:$0xff]
    %v157 = vld [vmem:[#allocation2 + $0x278] sm:$0xff]
    %v158 = vld [vmem:[#allocation2 + $0x280] sm:$0xff]
    %v159 = vld [vmem:[#allocation2 + $0x288] sm:$0xff]
    %v160 = vld [vmem:[#allocation2 + $0x290] sm:$0xff]
    %v161 = vld [vmem:[#allocation2 + $0x298] sm:$0xff]
    %v162 = vld [vmem:[#allocation2 + $0x2a0] sm:$0xff]
    %v163 = vld [vmem:[#allocation2 + $0x2a8] sm:$0xff]
    %v164 = vld [vmem:[#allocation2 + $0x2b0] sm:$0xff]
    %v165 = vld [vmem:[#allocation2 + $0x2b8] sm:$0xff]
    %v166 = vld [vmem:[#allocation2 + $0x2c0] sm:$0xff]
    %v167 = vld [vmem:[#allocation2 + $0x2c8] sm:$0xff]
    %v168 = vld [vmem:[#allocation2 + $0x2d0] sm:$0xff]
    %v169 = vld [vmem:[#allocation2 + $0x2d8] sm:$0xff]
    %v170 = vld [vmem:[#allocation2 + $0x2e0] sm:$0xff]
    %v171 = vld [vmem:[#allocation2 + $0x2e8] sm:$0xff]
    %v172 = vld [vmem:[#allocation2 + $0x2f0] sm:$0xff]
    %v173 = vld [vmem:[#allocation2 + $0x2f8] sm:$0xff]
    %v174 = vld [vmem:[#allocation2 + $0x300] sm:$0xff]
    %v175 = vld [vmem:[#allocation2 + $0x308] sm:$0xff]
    %v176 = vld [vmem:[#allocation2 + $0x310] sm:$0xff]
    %v177 = vld [vmem:[#allocation2 + $0x318] sm:$0xff]
    %v178 = vld [vmem:[#allocation2 + $0x320] sm:$0xff]
    %v179 = vld [vmem:[#allocation2 + $0x328] sm:$0xff]
    %v180 = vld [vmem:[#allocation2 + $0x330] sm:$0xff]
    %v181 = vld [vmem:[#allocation2 + $0x338] sm:$0xff]
    %v182 = vld [vmem:[#allocation2 + $0x340] sm:$0xff]
    %v183 = vld [vmem:[#allocation2 + $0x348] sm:$0xff]
    %v184 = vld [vmem:[#allocation2 + $0x350] sm:$0xff]
    %v185 = vld [vmem:[#allocation2 + $0x358] sm:$0xff]
    %v186 = vld [vmem:[#allocation2 + $0x360] sm:$0xff]
    %v187 = vld [vmem:[#allocation2 + $0x368] sm:$0xff]
    %v188 = vld [vmem:[#allocation2 + $0x370] sm:$0xff]
    %v189 = vld [vmem:[#allocation2 + $0x378] sm:$0xff]
    %v190 = vld [vmem:[#allocation2 + $0x380] sm:$0xff]
    %v191 = vld [vmem:[#allocation2 + $0x388] sm:$0xff]
    %v192 = vld [vmem:[#allocation2 + $0x390] sm:$0xff]
    %v193 = vld [vmem:[#allocation2 + $0x398] sm:$0xff]
    %v194 = vld [vmem:[#allocation2 + $0x3a0] sm:$0xff]
    %v195 = vld [vmem:[#allocation2 + $0x3a8] sm:$0xff]
    %v196 = vld [vmem:[#allocation2 + $0x3b0] sm:$0xff]
    %v197 = vld [vmem:[#allocation2 + $0x3b8] sm:$0xff]
    %v198 = vld [vmem:[#allocation2 + $0x3c0] sm:$0xff]
    %v199 = vld [vmem:[#allocation2 + $0x3c8] sm:$0xff]
    %v200 = vld [vmem:[#allocation2 + $0x3d0] sm:$0xff]
    %v201 = vld [vmem:[#allocation2 + $0x3d8] sm:$0xff]
    %v202 = vld [vmem:[#allocation2 + $0x3e0] sm:$0xff]
    %v203 = vld [vmem:[#allocation2 + $0x3e8] sm:$0xff]
    %v204 = vld [vmem:[#allocation2 + $0x3f0] sm:$0xff]
    %v205 = vld [vmem:[#allocation2 + $0x3f8] sm:$0xff]
    %v206 = vld [vmem:[#allocation2 + $0x400] sm:$0xff]
    %v207 = vld [vmem:[#allocation2 + $0x408] sm:$0xff]
    %v208 = vld [vmem:[#allocation2 + $0x410] sm:$0xff]
    %v209 = vld [vmem:[#allocation2 + $0x418] sm:$0xff]
    %v210 = vld [vmem:[#allocation2 + $0x420] sm:$0xff]
    %v211 = vld [vmem:[#allocation2 + $0x428] sm:$0xff]
    %v212 = vld [vmem:[#allocation2 + $0x430] sm:$0xff]
    %v213 = vld [vmem:[#allocation2 + $0x438] sm:$0xff]
    %v214 = vld [vmem:[#allocation2 + $0x440] sm:$0xff]
    %v215 = vld [vmem:[#allocation2 + $0x448] sm:$0xff]
    %v216 = vld [vmem:[#allocation2 + $0x450] sm:$0xff]
    %v217 = vld [vmem:[#allocation2 + $0x458] sm:$0xff]
    %v218 = vld [vmem:[#allocation2 + $0x460] sm:$0xff]
    %v219 = vld [vmem:[#allocation2 + $0x468] sm:$0xff]
    %v220 = vld [vmem:[#allocation2 + $0x470] sm:$0xff]
    %v221 = vld [vmem:[#allocation2 + $0x478] sm:$0xff]
    %v222 = vld [vmem:[#allocation2 + $0x480] sm:$0xff]
    %v223 = vld [vmem:[#allocation2 + $0x488] sm:$0xff]
    %v224 = vld [vmem:[#allocation2 + $0x490] sm:$0xff]
    %v225 = vld [vmem:[#allocation2 + $0x498] sm:$0xff]
    %v226 = vld [vmem:[#allocation2 + $0x4a0] sm:$0xff]
    %v227 = vld [vmem:[#allocation2 + $0x4a8] sm:$0xff]
    %v228 = vld [vmem:[#allocation2 + $0x4b0] sm:$0xff]
    %v229 = vld [vmem:[#allocation2 + $0x4b8] sm:$0xff]
    %v230 = vld [vmem:[#allocation2 + $0x4c0] sm:$0xff]
    %v231 = vld [vmem:[#allocation2 + $0x4c8] sm:$0xff]
    %v232 = vld [vmem:[#allocation2 + $0x4d0] sm:$0xff]
    %v233 = vld [vmem:[#allocation2 + $0x4d8] sm:$0xff]
    %v234 = vld [vmem:[#allocation2 + $0x4e0] sm:$0xff]
    %v235 = vld [vmem:[#allocation2 + $0x4e8] sm:$0xff]
    %v236 = vld [vmem:[#allocation2 + $0x4f0] sm:$0xff]
    %v237 = vld [vmem:[#allocation2 + $0x4f8] sm:$0xff]
    %v238 = vld [vmem:[#allocation2 + $0x500] sm:$0xff]
    %v239 = vld [vmem:[#allocation2 + $0x508] sm:$0xff]
    %v240 = vld [vmem:[#allocation2 + $0x510] sm:$0xff]
    %v241 = vld [vmem:[#allocation2 + $0x518] sm:$0xff]
    %v242 = vld [vmem:[#allocation2 + $0x520] sm:$0xff]
    %v243 = vld [vmem:[#allocation2 + $0x528] sm:$0xff]
    %v244 = vld [vmem:[#allocation2 + $0x530] sm:$0xff]
    %v245 = vld [vmem:[#allocation2 + $0x538] sm:$0xff]
    %v246 = vld [vmem:[#allocation2 + $0x540] sm:$0xff]
    %v247 = vld [vmem:[#allocation2 + $0x548] sm:$0xff]
    %v248 = vld [vmem:[#allocation2 + $0x550] sm:$0xff]
    %v249 = vld [vmem:[#allocation2 + $0x558] sm:$0xff]
    %v250 = vld [vmem:[#allocation2 + $0x560] sm:$0xff]
    %v251 = vld [vmem:[#allocation2 + $0x568] sm:$0xff]
    %v252 = vld [vmem:[#allocation2 + $0x570] sm:$0xff]
    %v253 = vld [vmem:[#allocation2 + $0x578] sm:$0xff]
    %v254 = vld [vmem:[#allocation2 + $0x580] sm:$0xff]
    %v255 = vld [vmem:[#allocation2 + $0x588] sm:$0xff]
    %v256 = vld [vmem:[#allocation2 + $0x590] sm:$0xff]
    %v257 = vld [vmem:[#allocation2 + $0x598] sm:$0xff]
    %v258 = vld [vmem:[#allocation2 + $0x5a0] sm:$0xff]
    %v259 = vld [vmem:[#allocation2 + $0x5a8] sm:$0xff]
    %v260 = vld [vmem:[#allocation2 + $0x5b0] sm:$0xff]
    %v261 = vld [vmem:[#allocation2 + $0x5b8] sm:$0xff]
    %v262 = vld [vmem:[#allocation2 + $0x5c0] sm:$0xff]
    %v263 = vld [vmem:[#allocation2 + $0x5c8] sm:$0xff]
    %v264 = vld [vmem:[#allocation2 + $0x5d0] sm:$0xff]
    %v265 = vld [vmem:[#allocation2 + $0x5d8] sm:$0xff]
    %v266 = vld [vmem:[#allocation2 + $0x5e0] sm:$0xff]
    %v267 = vld [vmem:[#allocation2 + $0x5e8] sm:$0xff]
    %v268 = vld [vmem:[#allocation2 + $0x5f0] sm:$0xff]
    %v269 = vld [vmem:[#allocation2 + $0x5f8] sm:$0xff]
    %v270 = vld [vmem:[#allocation2 + $0x600] sm:$0xff]
    %v271 = vld [vmem:[#allocation2 + $0x608] sm:$0xff]
    %v272 = vld [vmem:[#allocation2 + $0x610] sm:$0xff]
    %v273 = vld [vmem:[#allocation2 + $0x618] sm:$0xff]
    %v274 = vld [vmem:[%s2] sm:$0xf]
    %v276 = vperm.slane %v274, 0
    %v277 = vperm.slane %v274, 1
    %v278 = vperm.slane %v274, 2
    %v279 = vperm.slane %v274, 3
    %v288 = vunpack.c.l.b16 %v74
    %v289 = vunpack.c.h.b16 %v74
    %v290 = vunpack.c.l.b16 %v75
    %v291 = vunpack.c.h.b16 %v75
    %v292 = vunpack.c.l.b16 %v76
    %v293 = vunpack.c.h.b16 %v76
    %v294 = vunpack.c.l.b16 %v77
    %v295 = vpack.c.b16 %v288, %v288
    %v296 = vpack.c.b16 %v289, %v289
    %v297 = vpack.c.b16 %v290, %v290
    %v298 = vpack.c.b16 %v291, %v291
    %v299 = vpack.c.b16 %v292, %v292
    %v300 = vpack.c.b16 %v293, %v293
    %v301 = vpack.c.b16 %v294, %v294
    %v504 = vunpack.c.l.b16 %v78
    %v505 = vunpack.c.h.b16 %v78
    %v506 = vunpack.c.l.b16 %v79
    %v507 = vunpack.c.h.b16 %v79
    %v508 = vunpack.c.l.b16 %v80
    %v509 = vunpack.c.h.b16 %v80
    %v510 = vunpack.c.l.b16 %v81
    %v511 = vunpack.c.h.b16 %v81
    %v512 = vunpack.c.l.b16 %v82
    %v513 = vunpack.c.h.b16 %v82
    %v514 = vunpack.c.l.b16 %v83
    %v515 = vunpack.c.h.b16 %v83
    %v516 = vunpack.c.l.b16 %v84
    %v517 = vunpack.c.h.b16 %v84
    %v518 = vunpack.c.l.b16 %v85
    %v519 = vunpack.c.h.b16 %v85
    %v520 = vunpack.c.l.b16 %v86
    %v521 = vunpack.c.h.b16 %v86
    %v522 = vunpack.c.l.b16 %v87
    %v523 = vunpack.c.h.b16 %v87
    %v524 = vunpack.c.l.b16 %v88
    %v525 = vunpack.c.h.b16 %v88
    %v526 = vunpack.c.l.b16 %v89
    %v527 = vunpack.c.h.b16 %v89
    %v528 = vunpack.c.l.b16 %v90
    %v529 = vunpack.c.h.b16 %v90
    %v530 = vunpack.c.l.b16 %v91
    %v531 = vunpack.c.h.b16 %v91
    %v532 = vunpack.c.l.b16 %v92
    %v533 = vunpack.c.h.b16 %v92
    %v534 = vunpack.c.l.b16 %v93
    %v535 = vunpack.c.h.b16 %v93
    %v536 = vunpack.c.l.b16 %v94
    %v537 = vunpack.c.h.b16 %v94
    %v538 = vunpack.c.l.b16 %v95
    %v539 = vunpack.c.h.b16 %v95
    %v540 = vunpack.c.l.b16 %v96
    %v541 = vunpack.c.h.b16 %v96
    %v542 = vunpack.c.l.b16 %v97
    %v543 = vunpack.c.h.b16 %v97
    %v544 = vunpack.c.l.b16 %v98
    %v545 = vunpack.c.h.b16 %v98
    %v546 = vunpack.c.l.b16 %v99
    %v547 = vunpack.c.h.b16 %v99
    %v548 = vunpack.c.l.b16 %v100
    %v549 = vunpack.c.h.b16 %v100
    %v550 = vunpack.c.l.b16 %v101
    %v551 = vunpack.c.h.b16 %v101
    %v552 = vunpack.c.l.b16 %v102
    %v553 = vunpack.c.h.b16 %v102
    %v554 = vunpack.c.l.b16 %v103
    %v555 = vunpack.c.h.b16 %v103
    %v556 = vunpack.c.l.b16 %v104
    %v557 = vunpack.c.h.b16 %v104
    %v558 = vunpack.c.l.b16 %v105
    %v559 = vunpack.c.h.b16 %v105
    %v560 = vunpack.c.l.b16 %v106
    %v561 = vunpack.c.h.b16 %v106
    %v562 = vunpack.c.l.b16 %v107
    %v563 = vunpack.c.h.b16 %v107
    %v564 = vunpack.c.l.b16 %v108
    %v565 = vunpack.c.h.b16 %v108
    %v566 = vunpack.c.l.b16 %v109
    %v567 = vunpack.c.h.b16 %v109
    %v568 = vunpack.c.l.b16 %v110
    %v569 = vunpack.c.h.b16 %v110
    %v570 = vunpack.c.l.b16 %v111
    %v571 = vunpack.c.h.b16 %v111
    %v572 = vunpack.c.l.b16 %v112
    %v573 = vunpack.c.h.b16 %v112
    %v574 = vunpack.c.l.b16 %v113
    %v575 = vunpack.c.h.b16 %v113
    %v576 = vunpack.c.l.b16 %v114
    %v577 = vunpack.c.h.b16 %v114
    %v578 = vunpack.c.l.b16 %v115
    %v579 = vunpack.c.h.b16 %v115
    %v580 = vunpack.c.l.b16 %v116
    %v581 = vunpack.c.h.b16 %v116
    %v582 = vunpack.c.l.b16 %v117
    %v583 = vunpack.c.h.b16 %v117
    %v584 = vunpack.c.l.b16 %v118
    %v585 = vunpack.c.h.b16 %v118
    %v586 = vunpack.c.l.b16 %v119
    %v587 = vunpack.c.h.b16 %v119
    %v588 = vunpack.c.l.b16 %v120
    %v589 = vunpack.c.h.b16 %v120
    %v590 = vunpack.c.l.b16 %v121
    %v591 = vunpack.c.h.b16 %v121
    %v592 = vunpack.c.l.b16 %v122
    %v593 = vunpack.c.h.b16 %v122
    %v594 = vunpack.c.l.b16 %v123
    %v595 = vunpack.c.h.b16 %v123
    %v596 = vunpack.c.l.b16 %v124
    %v597 = vunpack.c.h.b16 %v124
    %v598 = vunpack.c.l.b16 %v125
    %v599 = vunpack.c.h.b16 %v125
    %v600 = vunpack.c.l.b16 %v126
    %v601 = vunpack.c.h.b16 %v126
    %v602 = vunpack.c.l.b16 %v127
    %v603 = vunpack.c.h.b16 %v127
    %v604 = vunpack.c.l.b16 %v128
    %v605 = vunpack.c.h.b16 %v128
    %v606 = vunpack.c.l.b16 %v129
    %v607 = vunpack.c.h.b16 %v129
    %v608 = vunpack.c.l.b16 %v130
    %v609 = vunpack.c.h.b16 %v130
    %v610 = vunpack.c.l.b16 %v131
    %v611 = vunpack.c.h.b16 %v131
    %v612 = vunpack.c.l.b16 %v132
    %v613 = vunpack.c.h.b16 %v132
    %v614 = vunpack.c.l.b16 %v133
    %v615 = vunpack.c.h.b16 %v133
    %v616 = vunpack.c.l.b16 %v134
    %v617 = vunpack.c.h.b16 %v134
    %v618 = vunpack.c.l.b16 %v135
    %v619 = vunpack.c.h.b16 %v135
    %v620 = vunpack.c.l.b16 %v136
    %v621 = vunpack.c.h.b16 %v136
    %v622 = vunpack.c.l.b16 %v137
    %v623 = vunpack.c.h.b16 %v137
    %v624 = vunpack.c.l.b16 %v138
    %v625 = vunpack.c.h.b16 %v138
    %v626 = vunpack.c.l.b16 %v139
    %v627 = vunpack.c.h.b16 %v139
    %v628 = vunpack.c.l.b16 %v140
    %v629 = vunpack.c.h.b16 %v140
    %v630 = vunpack.c.l.b16 %v141
    %v631 = vunpack.c.h.b16 %v141
    %v632 = vunpack.c.l.b16 %v142
    %v633 = vunpack.c.h.b16 %v142
    %v634 = vunpack.c.l.b16 %v143
    %v635 = vunpack.c.h.b16 %v143
    %v636 = vunpack.c.l.b16 %v144
    %v637 = vunpack.c.h.b16 %v144
    %v638 = vunpack.c.l.b16 %v145
    %v639 = vunpack.c.h.b16 %v145
    %v640 = vunpack.c.l.b16 %v146
    %v641 = vunpack.c.h.b16 %v146
    %v642 = vunpack.c.l.b16 %v147
    %v643 = vunpack.c.h.b16 %v147
    %v644 = vunpack.c.l.b16 %v148
    %v645 = vunpack.c.h.b16 %v148
    %v646 = vunpack.c.l.b16 %v149
    %v647 = vunpack.c.h.b16 %v149
    %v648 = vunpack.c.l.b16 %v150
    %v649 = vunpack.c.h.b16 %v150
    %v650 = vunpack.c.l.b16 %v151
    %v651 = vunpack.c.h.b16 %v151
    %v652 = vunpack.c.l.b16 %v152
    %v653 = vunpack.c.h.b16 %v152
    %v654 = vunpack.c.l.b16 %v153
    %v655 = vunpack.c.h.b16 %v153
    %v656 = vunpack.c.l.b16 %v154
    %v657 = vunpack.c.h.b16 %v154
    %v658 = vunpack.c.l.b16 %v155
    %v659 = vunpack.c.h.b16 %v155
    %v660 = vunpack.c.l.b16 %v156
    %v661 = vunpack.c.h.b16 %v156
    %v662 = vunpack.c.l.b16 %v157
    %v663 = vunpack.c.h.b16 %v157
    %v664 = vunpack.c.l.b16 %v158
    %v665 = vunpack.c.h.b16 %v158
    %v666 = vunpack.c.l.b16 %v159
    %v667 = vunpack.c.h.b16 %v159
    %v668 = vunpack.c.l.b16 %v160
    %v669 = vunpack.c.h.b16 %v160
    %v670 = vunpack.c.l.b16 %v161
    %v671 = vunpack.c.h.b16 %v161
    %v672 = vunpack.c.l.b16 %v162
    %v673 = vunpack.c.h.b16 %v162
    %v674 = vunpack.c.l.b16 %v163
    %v675 = vunpack.c.h.b16 %v163
    %v676 = vunpack.c.l.b16 %v164
    %v677 = vunpack.c.h.b16 %v164
    %v678 = vunpack.c.l.b16 %v165
    %v679 = vunpack.c.h.b16 %v165
    %v680 = vunpack.c.l.b16 %v166
    %v681 = vunpack.c.h.b16 %v166
    %v682 = vunpack.c.l.b16 %v167
    %v683 = vunpack.c.h.b16 %v167
    %v684 = vunpack.c.l.b16 %v168
    %v685 = vunpack.c.h.b16 %v168
    %v686 = vunpack.c.l.b16 %v169
    %v687 = vunpack.c.h.b16 %v169
    %v688 = vunpack.c.l.b16 %v170
    %v689 = vunpack.c.h.b16 %v170
    %v690 = vunpack.c.l.b16 %v171
    %v691 = vunpack.c.h.b16 %v171
    %v692 = vunpack.c.l.b16 %v172
    %v693 = vunpack.c.h.b16 %v172
    %v694 = vunpack.c.l.b16 %v173
    %v695 = vunpack.c.h.b16 %v173
    %v696 = vunpack.c.l.b16 %v174
    %v697 = vunpack.c.h.b16 %v174
    %v698 = vunpack.c.l.b16 %v175
    %v699 = vunpack.c.h.b16 %v175
    %v700 = vunpack.c.l.b16 %v176
    %v701 = vunpack.c.h.b16 %v176
    %v702 = vunpack.c.l.b16 %v177
    %v703 = vunpack.c.h.b16 %v177
    %v704 = vunpack.c.l.b16 %v178
    %v705 = vunpack.c.h.b16 %v178
    %v706 = vunpack.c.l.b16 %v179
    %v707 = vunpack.c.h.b16 %v179
    %v708 = vunpack.c.l.b16 %v180
    %v709 = vunpack.c.h.b16 %v180
    %v710 = vunpack.c.l.b16 %v181
    %v711 = vunpack.c.h.b16 %v181
    %v712 = vunpack.c.l.b16 %v182
    %v713 = vunpack.c.h.b16 %v182
    %v714 = vunpack.c.l.b16 %v183
    %v715 = vunpack.c.h.b16 %v183
    %v716 = vunpack.c.l.b16 %v184
    %v717 = vunpack.c.h.b16 %v184
    %v718 = vunpack.c.l.b16 %v185
    %v719 = vunpack.c.h.b16 %v185
    %v720 = vunpack.c.l.b16 %v186
    %v721 = vunpack.c.h.b16 %v186
    %v722 = vunpack.c.l.b16 %v187
    %v723 = vunpack.c.h.b16 %v187
    %v724 = vunpack.c.l.b16 %v188
    %v725 = vunpack.c.h.b16 %v188
    %v726 = vunpack.c.l.b16 %v189
    %v727 = vunpack.c.h.b16 %v189
    %v728 = vunpack.c.l.b16 %v190
    %v729 = vunpack.c.h.b16 %v190
    %v730 = vunpack.c.l.b16 %v191
    %v731 = vunpack.c.h.b16 %v191
    %v732 = vunpack.c.l.b16 %v192
    %v733 = vunpack.c.h.b16 %v192
    %v734 = vunpack.c.l.b16 %v193
    %v735 = vunpack.c.h.b16 %v193
    %v736 = vunpack.c.l.b16 %v194
    %v737 = vunpack.c.h.b16 %v194
    %v738 = vunpack.c.l.b16 %v195
    %v739 = vunpack.c.h.b16 %v195
    %v740 = vunpack.c.l.b16 %v196
    %v741 = vunpack.c.h.b16 %v196
    %v742 = vunpack.c.l.b16 %v197
    %v743 = vunpack.c.h.b16 %v197
    %v744 = vunpack.c.l.b16 %v198
    %v745 = vunpack.c.h.b16 %v198
    %v746 = vunpack.c.l.b16 %v199
    %v747 = vunpack.c.h.b16 %v199
    %v748 = vunpack.c.l.b16 %v200
    %v749 = vunpack.c.h.b16 %v200
    %v750 = vunpack.c.l.b16 %v201
    %v751 = vunpack.c.h.b16 %v201
    %v752 = vunpack.c.l.b16 %v202
    %v753 = vunpack.c.h.b16 %v202
    %v754 = vunpack.c.l.b16 %v203
    %v755 = vunpack.c.h.b16 %v203
    %v756 = vunpack.c.l.b16 %v204
    %v757 = vunpack.c.h.b16 %v204
    %v758 = vunpack.c.l.b16 %v205
    %v759 = vunpack.c.h.b16 %v205
    %v760 = vunpack.c.l.b16 %v206
    %v761 = vunpack.c.h.b16 %v206
    %v762 = vunpack.c.l.b16 %v207
    %v763 = vunpack.c.h.b16 %v207
    %v764 = vunpack.c.l.b16 %v208
    %v765 = vunpack.c.h.b16 %v208
    %v766 = vunpack.c.l.b16 %v209
    %v767 = vunpack.c.h.b16 %v209
    %v768 = vunpack.c.l.b16 %v210
    %v769 = vunpack.c.h.b16 %v210
    %v770 = vunpack.c.l.b16 %v211
    %v771 = vunpack.c.h.b16 %v211
    %v772 = vunpack.c.l.b16 %v212
    %v773 = vunpack.c.h.b16 %v212
    %v774 = vunpack.c.l.b16 %v213
    %v775 = vunpack.c.h.b16 %v213
    %v776 = vunpack.c.l.b16 %v214
    %v777 = vunpack.c.h.b16 %v214
    %v778 = vunpack.c.l.b16 %v215
    %v779 = vunpack.c.h.b16 %v215
    %v780 = vunpack.c.l.b16 %v216
    %v781 = vunpack.c.h.b16 %v216
    %v782 = vunpack.c.l.b16 %v217
    %v783 = vunpack.c.h.b16 %v217
    %v784 = vunpack.c.l.b16 %v218
    %v785 = vunpack.c.h.b16 %v218
    %v786 = vunpack.c.l.b16 %v219
    %v787 = vunpack.c.h.b16 %v219
    %v788 = vunpack.c.l.b16 %v220
    %v789 = vunpack.c.h.b16 %v220
    %v790 = vunpack.c.l.b16 %v221
    %v791 = vunpack.c.h.b16 %v221
    %v792 = vunpack.c.l.b16 %v222
    %v793 = vunpack.c.h.b16 %v222
    %v794 = vunpack.c.l.b16 %v223
    %v795 = vunpack.c.h.b16 %v223
    %v796 = vunpack.c.l.b16 %v224
    %v797 = vunpack.c.h.b16 %v224
    %v798 = vunpack.c.l.b16 %v225
    %v799 = vunpack.c.h.b16 %v225
    %v800 = vunpack.c.l.b16 %v226
    %v801 = vunpack.c.h.b16 %v226
    %v802 = vunpack.c.l.b16 %v227
    %v803 = vunpack.c.h.b16 %v227
    %v804 = vunpack.c.l.b16 %v228
    %v805 = vunpack.c.h.b16 %v228
    %v806 = vunpack.c.l.b16 %v229
    %v807 = vunpack.c.h.b16 %v229
    %v808 = vunpack.c.l.b16 %v230
    %v809 = vunpack.c.h.b16 %v230
    %v810 = vunpack.c.l.b16 %v231
    %v811 = vunpack.c.h.b16 %v231
    %v812 = vunpack.c.l.b16 %v232
    %v813 = vunpack.c.h.b16 %v232
    %v814 = vunpack.c.l.b16 %v233
    %v815 = vunpack.c.h.b16 %v233
    %v816 = vunpack.c.l.b16 %v234
    %v817 = vunpack.c.h.b16 %v234
    %v818 = vunpack.c.l.b16 %v235
    %v819 = vunpack.c.h.b16 %v235
    %v820 = vunpack.c.l.b16 %v236
    %v821 = vunpack.c.h.b16 %v236
    %v822 = vunpack.c.l.b16 %v237
    %v823 = vunpack.c.h.b16 %v237
    %v824 = vunpack.c.l.b16 %v238
    %v825 = vunpack.c.h.b16 %v238
    %v826 = vunpack.c.l.b16 %v239
    %v827 = vunpack.c.h.b16 %v239
    %v828 = vunpack.c.l.b16 %v240
    %v829 = vunpack.c.h.b16 %v240
    %v830 = vunpack.c.l.b16 %v241
    %v831 = vunpack.c.h.b16 %v241
    %v832 = vunpack.c.l.b16 %v242
    %v833 = vunpack.c.h.b16 %v242
    %v834 = vunpack.c.l.b16 %v243
    %v835 = vunpack.c.h.b16 %v243
    %v836 = vunpack.c.l.b16 %v244
    %v837 = vunpack.c.h.b16 %v244
    %v838 = vunpack.c.l.b16 %v245
    %v839 = vunpack.c.h.b16 %v245
    %v840 = vunpack.c.l.b16 %v246
    %v841 = vunpack.c.h.b16 %v246
    %v842 = vunpack.c.l.b16 %v247
    %v843 = vunpack.c.h.b16 %v247
    %v844 = vunpack.c.l.b16 %v248
    %v845 = vunpack.c.h.b16 %v248
    %v846 = vunpack.c.l.b16 %v249
    %v847 = vunpack.c.h.b16 %v249
    %v848 = vunpack.c.l.b16 %v250
    %v849 = vunpack.c.h.b16 %v250
    %v850 = vunpack.c.l.b16 %v251
    %v851 = vunpack.c.h.b16 %v251
    %v852 = vunpack.c.l.b16 %v252
    %v853 = vunpack.c.h.b16 %v252
    %v854 = vunpack.c.l.b16 %v253
    %v855 = vunpack.c.h.b16 %v253
    %v856 = vunpack.c.l.b16 %v254
    %v857 = vunpack.c.h.b16 %v254
    %v858 = vunpack.c.l.b16 %v255
    %v859 = vunpack.c.h.b16 %v255
    %v860 = vunpack.c.l.b16 %v256
    %v861 = vunpack.c.h.b16 %v256
    %v862 = vunpack.c.l.b16 %v257
    %v863 = vunpack.c.h.b16 %v257
    %v864 = vunpack.c.l.b16 %v258
    %v865 = vunpack.c.h.b16 %v258
    %v866 = vunpack.c.l.b16 %v259
    %v867 = vunpack.c.h.b16 %v259
    %v868 = vunpack.c.l.b16 %v260
    %v869 = vunpack.c.h.b16 %v260
    %v870 = vunpack.c.l.b16 %v261
    %v871 = vunpack.c.h.b16 %v261
    %v872 = vunpack.c.l.b16 %v262
    %v873 = vunpack.c.h.b16 %v262
    %v874 = vunpack.c.l.b16 %v263
    %v875 = vunpack.c.h.b16 %v263
    %v876 = vunpack.c.l.b16 %v264
    %v877 = vunpack.c.h.b16 %v264
    %v878 = vunpack.c.l.b16 %v265
    %v879 = vunpack.c.h.b16 %v265
    %v880 = vunpack.c.l.b16 %v266
    %v881 = vunpack.c.h.b16 %v266
    %v882 = vunpack.c.l.b16 %v267
    %v883 = vunpack.c.h.b16 %v267
    %v884 = vunpack.c.l.b16 %v268
    %v885 = vunpack.c.h.b16 %v268
    %v886 = vunpack.c.l.b16 %v269
    %v887 = vunpack.c.h.b16 %v269
    %v888 = vunpack.c.l.b16 %v270
    %v889 = vunpack.c.h.b16 %v270
    %v890 = vunpack.c.l.b16 %v271
    %v891 = vunpack.c.h.b16 %v271
    %v892 = vunpack.c.l.b16 %v272
    %v893 = vunpack.c.h.b16 %v272
    %v894 = vunpack.c.l.b16 %v273
    %v895 = vunpack.c.h.b16 %v273
    %v896 = vpack.c.b16 %v508, %v504
    %v897 = vpack.c.b16 %v509, %v505
    %v898 = vpack.c.b16 %v510, %v506
    %v899 = vpack.c.b16 %v511, %v507
    %v900 = vpack.c.b16 %v516, %v512
    %v901 = vpack.c.b16 %v517, %v513
    %v902 = vpack.c.b16 %v518, %v514
    %v903 = vpack.c.b16 %v519, %v515
    %v904 = vpack.c.b16 %v524, %v520
    %v905 = vpack.c.b16 %v525, %v521
    %v906 = vpack.c.b16 %v526, %v522
    %v907 = vpack.c.b16 %v527, %v523
    %v908 = vpack.c.b16 %v532, %v528
    %v909 = vpack.c.b16 %v533, %v529
    %v910 = vpack.c.b16 %v534, %v530
    %v911 = vpack.c.b16 %v535, %v531
    %v912 = vpack.c.b16 %v540, %v536
    %v913 = vpack.c.b16 %v541, %v537
    %v914 = vpack.c.b16 %v542, %v538
    %v915 = vpack.c.b16 %v543, %v539
    %v916 = vpack.c.b16 %v548, %v544
    %v917 = vpack.c.b16 %v549, %v545
    %v918 = vpack.c.b16 %v550, %v546
    %v919 = vpack.c.b16 %v551, %v547
    %v920 = vpack.c.b16 %v556, %v552
    %v921 = vpack.c.b16 %v557, %v553
    %v922 = vpack.c.b16 %v558, %v554
    %v923 = vpack.c.b16 %v559, %v555
    %v924 = vpack.c.b16 %v564, %v560
    %v925 = vpack.c.b16 %v565, %v561
    %v926 = vpack.c.b16 %v566, %v562
    %v927 = vpack.c.b16 %v567, %v563
    %v928 = vpack.c.b16 %v572, %v568
    %v929 = vpack.c.b16 %v573, %v569
    %v930 = vpack.c.b16 %v574, %v570
    %v931 = vpack.c.b16 %v575, %v571
    %v932 = vpack.c.b16 %v580, %v576
    %v933 = vpack.c.b16 %v581, %v577
    %v934 = vpack.c.b16 %v582, %v578
    %v935 = vpack.c.b16 %v583, %v579
    %v936 = vpack.c.b16 %v588, %v584
    %v937 = vpack.c.b16 %v589, %v585
    %v938 = vpack.c.b16 %v590, %v586
    %v939 = vpack.c.b16 %v591, %v587
    %v940 = vpack.c.b16 %v596, %v592
    %v941 = vpack.c.b16 %v597, %v593
    %v942 = vpack.c.b16 %v598, %v594
    %v943 = vpack.c.b16 %v599, %v595
    %v944 = vpack.c.b16 %v604, %v600
    %v945 = vpack.c.b16 %v605, %v601
    %v946 = vpack.c.b16 %v606, %v602
    %v947 = vpack.c.b16 %v607, %v603
    %v948 = vpack.c.b16 %v612, %v608
    %v949 = vpack.c.b16 %v613, %v609
    %v950 = vpack.c.b16 %v614, %v610
    %v951 = vpack.c.b16 %v615, %v611
    %v952 = vpack.c.b16 %v620, %v616
    %v953 = vpack.c.b16 %v621, %v617
    %v954 = vpack.c.b16 %v622, %v618
    %v955 = vpack.c.b16 %v623, %v619
    %v956 = vpack.c.b16 %v628, %v624
    %v957 = vpack.c.b16 %v629, %v625
    %v958 = vpack.c.b16 %v630, %v626
    %v959 = vpack.c.b16 %v631, %v627
    %v960 = vpack.c.b16 %v636, %v632
    %v961 = vpack.c.b16 %v637, %v633
    %v962 = vpack.c.b16 %v638, %v634
    %v963 = vpack.c.b16 %v639, %v635
    %v964 = vpack.c.b16 %v644, %v640
    %v965 = vpack.c.b16 %v645, %v641
    %v966 = vpack.c.b16 %v646, %v642
    %v967 = vpack.c.b16 %v647, %v643
    %v968 = vpack.c.b16 %v652, %v648
    %v969 = vpack.c.b16 %v653, %v649
    %v970 = vpack.c.b16 %v654, %v650
    %v971 = vpack.c.b16 %v655, %v651
    %v972 = vpack.c.b16 %v660, %v656
    %v973 = vpack.c.b16 %v661, %v657
    %v974 = vpack.c.b16 %v662, %v658
    %v975 = vpack.c.b16 %v663, %v659
    %v976 = vpack.c.b16 %v668, %v664
    %v977 = vpack.c.b16 %v669, %v665
    %v978 = vpack.c.b16 %v670, %v666
    %v979 = vpack.c.b16 %v671, %v667
    %v980 = vpack.c.b16 %v676, %v672
    %v981 = vpack.c.b16 %v677, %v673
    %v982 = vpack.c.b16 %v678, %v674
    %v983 = vpack.c.b16 %v679, %v675
    %v984 = vpack.c.b16 %v684, %v680
    %v985 = vpack.c.b16 %v685, %v681
    %v986 = vpack.c.b16 %v686, %v682
    %v987 = vpack.c.b16 %v687, %v683
    %v988 = vpack.c.b16 %v692, %v688
    %v989 = vpack.c.b16 %v693, %v689
    %v990 = vpack.c.b16 %v694, %v690
    %v991 = vpack.c.b16 %v695, %v691
    %v992 = vpack.c.b16 %v700, %v696
    %v993 = vpack.c.b16 %v701, %v697
    %v994 = vpack.c.b16 %v702, %v698
    %v995 = vpack.c.b16 %v703, %v699
    %v996 = vpack.c.b16 %v708, %v704
    %v997 = vpack.c.b16 %v709, %v705
    %v998 = vpack.c.b16 %v710, %v706
    %v999 = vpack.c.b16 %v711, %v707
    %v1000 = vpack.c.b16 %v716, %v712
    %v1001 = vpack.c.b16 %v717, %v713
    %v1002 = vpack.c.b16 %v718, %v714
    %v1003 = vpack.c.b16 %v719, %v715
    %v1004 = vpack.c.b16 %v724, %v720
    %v1005 = vpack.c.b16 %v725, %v721
    %v1006 = vpack.c.b16 %v726, %v722
    %v1007 = vpack.c.b16 %v727, %v723
    %v1008 = vpack.c.b16 %v732, %v728
    %v1009 = vpack.c.b16 %v733, %v729
    %v1010 = vpack.c.b16 %v734, %v730
    %v1011 = vpack.c.b16 %v735, %v731
    %v1012 = vpack.c.b16 %v740, %v736
    %v1013 = vpack.c.b16 %v741, %v737
    %v1014 = vpack.c.b16 %v742, %v738
    %v1015 = vpack.c.b16 %v743, %v739
    %v1016 = vpack.c.b16 %v748, %v744
    %v1017 = vpack.c.b16 %v749, %v745
    %v1018 = vpack.c.b16 %v750, %v746
    %v1019 = vpack.c.b16 %v751, %v747
    %v1020 = vpack.c.b16 %v756, %v752
    %v1021 = vpack.c.b16 %v757, %v753
    %v1022 = vpack.c.b16 %v758, %v754
    %v1023 = vpack.c.b16 %v759, %v755
    %v1024 = vpack.c.b16 %v764, %v760
    %v1025 = vpack.c.b16 %v765, %v761
    %v1026 = vpack.c.b16 %v766, %v762
    %v1027 = vpack.c.b16 %v767, %v763
    %v1028 = vpack.c.b16 %v772, %v768
    %v1029 = vpack.c.b16 %v773, %v769
    %v1030 = vpack.c.b16 %v774, %v770
    %v1031 = vpack.c.b16 %v775, %v771
    %v1032 = vpack.c.b16 %v780, %v776
    %v1033 = vpack.c.b16 %v781, %v777
    %v1034 = vpack.c.b16 %v782, %v778
    %v1035 = vpack.c.b16 %v783, %v779
    %v1036 = vpack.c.b16 %v788, %v784
    %v1037 = vpack.c.b16 %v789, %v785
    %v1038 = vpack.c.b16 %v790, %v786
    %v1039 = vpack.c.b16 %v791, %v787
    %v1040 = vpack.c.b16 %v796, %v792
    %v1041 = vpack.c.b16 %v797, %v793
    %v1042 = vpack.c.b16 %v798, %v794
    %v1043 = vpack.c.b16 %v799, %v795
    %v1044 = vpack.c.b16 %v804, %v800
    %v1045 = vpack.c.b16 %v805, %v801
    %v1046 = vpack.c.b16 %v806, %v802
    %v1047 = vpack.c.b16 %v807, %v803
    %v1048 = vpack.c.b16 %v812, %v808
    %v1049 = vpack.c.b16 %v813, %v809
    %v1050 = vpack.c.b16 %v814, %v810
    %v1051 = vpack.c.b16 %v815, %v811
    %v1052 = vpack.c.b16 %v820, %v816
    %v1053 = vpack.c.b16 %v821, %v817
    %v1054 = vpack.c.b16 %v822, %v818
    %v1055 = vpack.c.b16 %v823, %v819
    %v1056 = vpack.c.b16 %v828, %v824
    %v1057 = vpack.c.b16 %v829, %v825
    %v1058 = vpack.c.b16 %v830, %v826
    %v1059 = vpack.c.b16 %v831, %v827
    %v1060 = vpack.c.b16 %v836, %v832
    %v1061 = vpack.c.b16 %v837, %v833
    %v1062 = vpack.c.b16 %v838, %v834
    %v1063 = vpack.c.b16 %v839, %v835
    %v1064 = vpack.c.b16 %v844, %v840
    %v1065 = vpack.c.b16 %v845, %v841
    %v1066 = vpack.c.b16 %v846, %v842
    %v1067 = vpack.c.b16 %v847, %v843
    %v1068 = vpack.c.b16 %v852, %v848
    %v1069 = vpack.c.b16 %v853, %v849
    %v1070 = vpack.c.b16 %v854, %v850
    %v1071 = vpack.c.b16 %v855, %v851
    %v1072 = vpack.c.b16 %v860, %v856
    %v1073 = vpack.c.b16 %v861, %v857
    %v1074 = vpack.c.b16 %v862, %v858
    %v1075 = vpack.c.b16 %v863, %v859
    %v1076 = vpack.c.b16 %v868, %v864
    %v1077 = vpack.c.b16 %v869, %v865
    %v1078 = vpack.c.b16 %v870, %v866
    %v1079 = vpack.c.b16 %v871, %v867
    %v1080 = vpack.c.b16 %v876, %v872
    %v1081 = vpack.c.b16 %v877, %v873
    %v1082 = vpack.c.b16 %v878, %v874
    %v1083 = vpack.c.b16 %v879, %v875
    %v1084 = vpack.c.b16 %v884, %v880
    %v1085 = vpack.c.b16 %v885, %v881
    %v1086 = vpack.c.b16 %v886, %v882
    %v1087 = vpack.c.b16 %v887, %v883
    %v1088 = vpack.c.b16 %v892, %v888
    %v1089 = vpack.c.b16 %v893, %v889
    %v1090 = vpack.c.b16 %v894, %v890
    %v1091 = vpack.c.b16 %v895, %v891
    %vm1288 = vcmask 130048
    %v1290 = vsel %vm1288, %v301, 0
    %1292 = vmatpush.bf16.msra.mxu0 %v924
    %1293 = vmatpush.bf16.msra.mxu0 %v920
    %1294 = vmatpush.bf16.msra.mxu0 %v916
    %1295 = vmatpush.bf16.msra.mxu0 %v912
    %1296 = vmatpush.bf16.msra.mxu0 %v908
    %1297 = vmatpush.bf16.msra.mxu0 %v904
    %1298 = vmatpush.bf16.msra.mxu0 %v900
    %1299 = vmatpush.bf16.msra.mxu0 %v896
    %1300 = vmatmul.bf16.gmra.mxu0 %v295
    %v1301 = vpop.f32.mrf.mxu0
    %v1302 = vadd.f32 %v276, %v1301
    %v1303 = vpop.f32.mrf.mxu0
    %1304 = vdwg.mxu0
    %1305 = vmatpush.bf16.msra.mxu0 %v956
    %1306 = vmatpush.bf16.msra.mxu0 %v952
    %1307 = vmatpush.bf16.msra.mxu0 %v948
    %1308 = vmatpush.bf16.msra.mxu0 %v944
    %1309 = vmatpush.bf16.msra.mxu0 %v940
    %1310 = vmatpush.bf16.msra.mxu0 %v936
    %1311 = vmatpush.bf16.msra.mxu0 %v932
    %1312 = vmatpush.bf16.msra.mxu0 %v928
    %1313 = vmatmul.bf16.gmra.mxu0 %v296
    %v1314 = vpop.f32.mrf.mxu0
    %v1315 = vadd.f32 %v1302, %v1314
    %v1316 = vpop.f32.mrf.mxu0
    %1317 = vdwg.mxu0
    %1318 = vmatpush.bf16.msra.mxu0 %v988
    %1319 = vmatpush.bf16.msra.mxu0 %v984
    %1320 = vmatpush.bf16.msra.mxu0 %v980
    %1321 = vmatpush.bf16.msra.mxu0 %v976
    %1322 = vmatpush.bf16.msra.mxu0 %v972
    %1323 = vmatpush.bf16.msra.mxu0 %v968
    %1324 = vmatpush.bf16.msra.mxu0 %v964
    %1325 = vmatpush.bf16.msra.mxu0 %v960
    %1326 = vmatmul.bf16.gmra.mxu0 %v297
    %v1327 = vpop.f32.mrf.mxu0
    %v1328 = vadd.f32 %v1315, %v1327
    %v1329 = vpop.f32.mrf.mxu0
    %1330 = vdwg.mxu0
    %1331 = vmatpush.bf16.msra.mxu0 %v1020
    %1332 = vmatpush.bf16.msra.mxu0 %v1016
    %1333 = vmatpush.bf16.msra.mxu0 %v1012
    %1334 = vmatpush.bf16.msra.mxu0 %v1008
    %1335 = vmatpush.bf16.msra.mxu0 %v1004
    %1336 = vmatpush.bf16.msra.mxu0 %v1000
    %1337 = vmatpush.bf16.msra.mxu0 %v996
    %1338 = vmatpush.bf16.msra.mxu0 %v992
    %1339 = vmatmul.bf16.gmra.mxu0 %v298
    %v1340 = vpop.f32.mrf.mxu0
    %v1341 = vadd.f32 %v1328, %v1340
    %v1342 = vpop.f32.mrf.mxu0
    %1343 = vdwg.mxu0
    %1344 = vmatpush.bf16.msra.mxu0 %v1052
    %1345 = vmatpush.bf16.msra.mxu0 %v1048
    %1346 = vmatpush.bf16.msra.mxu0 %v1044
    %1347 = vmatpush.bf16.msra.mxu0 %v1040
    %1348 = vmatpush.bf16.msra.mxu0 %v1036
    %1349 = vmatpush.bf16.msra.mxu0 %v1032
    %1350 = vmatpush.bf16.msra.mxu0 %v1028
    %1351 = vmatpush.bf16.msra.mxu0 %v1024
    %1352 = vmatmul.bf16.gmra.mxu0 %v299
    %v1353 = vpop.f32.mrf.mxu0
    %v1354 = vadd.f32 %v1341, %v1353
    %v1355 = vpop.f32.mrf.mxu0
    %1356 = vdwg.mxu0
    %1357 = vmatpush.bf16.msra.mxu0 %v1084
    %1358 = vmatpush.bf16.msra.mxu0 %v1080
    %1359 = vmatpush.bf16.msra.mxu0 %v1076
    %1360 = vmatpush.bf16.msra.mxu0 %v1072
    %1361 = vmatpush.bf16.msra.mxu0 %v1068
    %1362 = vmatpush.bf16.msra.mxu0 %v1064
    %1363 = vmatpush.bf16.msra.mxu0 %v1060
    %1364 = vmatpush.bf16.msra.mxu0 %v1056
    %1365 = vmatmul.bf16.gmra.mxu0 %v300
    %v1366 = vpop.f32.mrf.mxu0
    %v1367 = vadd.f32 %v1354, %v1366
    %v1368 = vpop.f32.mrf.mxu0
    %1369 = vdwg.mxu0
    %1370 = vmatpush.bf16.msra.mxu0 0
    %1371 = vmatpush.bf16.msra.mxu0 0
    %1372 = vmatpush.bf16.msra.mxu0 0
    %1373 = vmatpush.bf16.msra.mxu0 0
    %1374 = vmatpush.bf16.msra.mxu0 0
    %1375 = vmatpush.bf16.msra.mxu0 0
    %1376 = vmatpush.bf16.msra.mxu0 0
    %1377 = vmatpush.bf16.msra.mxu0 %v1088
    %1378 = vmatmul.bf16.gmra.mxu0 %v1290
    %v1379 = vpop.f32.mrf.mxu0
    %v1380 = vadd.f32 %v1367, %v1379
    %v1381 = vpop.f32.mrf.mxu0
    %1382 = vdwg.mxu0
    %1383 = vmatpush.bf16.msra.mxu0 %v925
    %1384 = vmatpush.bf16.msra.mxu0 %v921
    %1385 = vmatpush.bf16.msra.mxu0 %v917
    %1386 = vmatpush.bf16.msra.mxu0 %v913
    %1387 = vmatpush.bf16.msra.mxu0 %v909
    %1388 = vmatpush.bf16.msra.mxu0 %v905
    %1389 = vmatpush.bf16.msra.mxu0 %v901
    %1390 = vmatpush.bf16.msra.mxu0 %v897
    %1391 = vmatmul.bf16.gmra.mxu0 %v295
    %v1392 = vpop.f32.mrf.mxu0
    %v1393 = vadd.f32 %v277, %v1392
    %v1394 = vpop.f32.mrf.mxu0
    %1395 = vdwg.mxu0
    %1396 = vmatpush.bf16.msra.mxu0 %v957
    %1397 = vmatpush.bf16.msra.mxu0 %v953
    %1398 = vmatpush.bf16.msra.mxu0 %v949
    %1399 = vmatpush.bf16.msra.mxu0 %v945
    %1400 = vmatpush.bf16.msra.mxu0 %v941
    %1401 = vmatpush.bf16.msra.mxu0 %v937
    %1402 = vmatpush.bf16.msra.mxu0 %v933
    %1403 = vmatpush.bf16.msra.mxu0 %v929
    %1404 = vmatmul.bf16.gmra.mxu0 %v296
    %v1405 = vpop.f32.mrf.mxu0
    %v1406 = vadd.f32 %v1393, %v1405
    %v1407 = vpop.f32.mrf.mxu0
    %1408 = vdwg.mxu0
    %1409 = vmatpush.bf16.msra.mxu0 %v989
    %1410 = vmatpush.bf16.msra.mxu0 %v985
    %1411 = vmatpush.bf16.msra.mxu0 %v981
    %1412 = vmatpush.bf16.msra.mxu0 %v977
    %1413 = vmatpush.bf16.msra.mxu0 %v973
    %1414 = vmatpush.bf16.msra.mxu0 %v969
    %1415 = vmatpush.bf16.msra.mxu0 %v965
    %1416 = vmatpush.bf16.msra.mxu0 %v961
    %1417 = vmatmul.bf16.gmra.mxu0 %v297
    %v1418 = vpop.f32.mrf.mxu0
    %v1419 = vadd.f32 %v1406, %v1418
    %v1420 = vpop.f32.mrf.mxu0
    %1421 = vdwg.mxu0
    %1422 = vmatpush.bf16.msra.mxu0 %v1021
    %1423 = vmatpush.bf16.msra.mxu0 %v1017
    %1424 = vmatpush.bf16.msra.mxu0 %v1013
    %1425 = vmatpush.bf16.msra.mxu0 %v1009
    %1426 = vmatpush.bf16.msra.mxu0 %v1005
    %1427 = vmatpush.bf16.msra.mxu0 %v1001
    %1428 = vmatpush.bf16.msra.mxu0 %v997
    %1429 = vmatpush.bf16.msra.mxu0 %v993
    %1430 = vmatmul.bf16.gmra.mxu0 %v298
    %v1431 = vpop.f32.mrf.mxu0
    %v1432 = vadd.f32 %v1419, %v1431
    %v1433 = vpop.f32.mrf.mxu0
    %1434 = vdwg.mxu0
    %1435 = vmatpush.bf16.msra.mxu0 %v1053
    %1436 = vmatpush.bf16.msra.mxu0 %v1049
    %1437 = vmatpush.bf16.msra.mxu0 %v1045
    %1438 = vmatpush.bf16.msra.mxu0 %v1041
    %1439 = vmatpush.bf16.msra.mxu0 %v1037
    %1440 = vmatpush.bf16.msra.mxu0 %v1033
    %1441 = vmatpush.bf16.msra.mxu0 %v1029
    %1442 = vmatpush.bf16.msra.mxu0 %v1025
    %1443 = vmatmul.bf16.gmra.mxu0 %v299
    %v1444 = vpop.f32.mrf.mxu0
    %v1445 = vadd.f32 %v1432, %v1444
    %v1446 = vpop.f32.mrf.mxu0
    %1447 = vdwg.mxu0
    %1448 = vmatpush.bf16.msra.mxu0 %v1085
    %1449 = vmatpush.bf16.msra.mxu0 %v1081
    %1450 = vmatpush.bf16.msra.mxu0 %v1077
    %1451 = vmatpush.bf16.msra.mxu0 %v1073
    %1452 = vmatpush.bf16.msra.mxu0 %v1069
    %1453 = vmatpush.bf16.msra.mxu0 %v1065
    %1454 = vmatpush.bf16.msra.mxu0 %v1061
    %1455 = vmatpush.bf16.msra.mxu0 %v1057
    %1456 = vmatmul.bf16.gmra.mxu0 %v300
    %v1457 = vpop.f32.mrf.mxu0
    %v1458 = vadd.f32 %v1445, %v1457
    %v1459 = vpop.f32.mrf.mxu0
    %1460 = vdwg.mxu0
    %1461 = vmatpush.bf16.msra.mxu0 0
    %1462 = vmatpush.bf16.msra.mxu0 0
    %1463 = vmatpush.bf16.msra.mxu0 0
    %1464 = vmatpush.bf16.msra.mxu0 0
    %1465 = vmatpush.bf16.msra.mxu0 0
    %1466 = vmatpush.bf16.msra.mxu0 0
    %1467 = vmatpush.bf16.msra.mxu0 0
    %1468 = vmatpush.bf16.msra.mxu0 %v1089
    %1469 = vmatmul.bf16.gmra.mxu0 %v1290
    %v1470 = vpop.f32.mrf.mxu0
    %v1471 = vadd.f32 %v1458, %v1470
    %v1472 = vpop.f32.mrf.mxu0
    %1473 = vdwg.mxu0
    %1474 = vmatpush.bf16.msra.mxu0 %v926
    %1475 = vmatpush.bf16.msra.mxu0 %v922
    %1476 = vmatpush.bf16.msra.mxu0 %v918
    %1477 = vmatpush.bf16.msra.mxu0 %v914
    %1478 = vmatpush.bf16.msra.mxu0 %v910
    %1479 = vmatpush.bf16.msra.mxu0 %v906
    %1480 = vmatpush.bf16.msra.mxu0 %v902
    %1481 = vmatpush.bf16.msra.mxu0 %v898
    %1482 = vmatmul.bf16.gmra.mxu0 %v295
    %v1483 = vpop.f32.mrf.mxu0
    %v1484 = vadd.f32 %v278, %v1483
    %v1485 = vpop.f32.mrf.mxu0
    %1486 = vdwg.mxu0
    %1487 = vmatpush.bf16.msra.mxu0 %v958
    %1488 = vmatpush.bf16.msra.mxu0 %v954
    %1489 = vmatpush.bf16.msra.mxu0 %v950
    %1490 = vmatpush.bf16.msra.mxu0 %v946
    %1491 = vmatpush.bf16.msra.mxu0 %v942
    %1492 = vmatpush.bf16.msra.mxu0 %v938
    %1493 = vmatpush.bf16.msra.mxu0 %v934
    %1494 = vmatpush.bf16.msra.mxu0 %v930
    %1495 = vmatmul.bf16.gmra.mxu0 %v296
    %v1496 = vpop.f32.mrf.mxu0
    %v1497 = vadd.f32 %v1484, %v1496
    %v1498 = vpop.f32.mrf.mxu0
    %1499 = vdwg.mxu0
    %1500 = vmatpush.bf16.msra.mxu0 %v990
    %1501 = vmatpush.bf16.msra.mxu0 %v986
    %1502 = vmatpush.bf16.msra.mxu0 %v982
    %1503 = vmatpush.bf16.msra.mxu0 %v978
    %1504 = vmatpush.bf16.msra.mxu0 %v974
    %1505 = vmatpush.bf16.msra.mxu0 %v970
    %1506 = vmatpush.bf16.msra.mxu0 %v966
    %1507 = vmatpush.bf16.msra.mxu0 %v962
    %1508 = vmatmul.bf16.gmra.mxu0 %v297
    %v1509 = vpop.f32.mrf.mxu0
    %v1510 = vadd.f32 %v1497, %v1509
    %v1511 = vpop.f32.mrf.mxu0
    %1512 = vdwg.mxu0
    %1513 = vmatpush.bf16.msra.mxu0 %v1022
    %1514 = vmatpush.bf16.msra.mxu0 %v1018
    %1515 = vmatpush.bf16.msra.mxu0 %v1014
    %1516 = vmatpush.bf16.msra.mxu0 %v1010
    %1517 = vmatpush.bf16.msra.mxu0 %v1006
    %1518 = vmatpush.bf16.msra.mxu0 %v1002
    %1519 = vmatpush.bf16.msra.mxu0 %v998
    %1520 = vmatpush.bf16.msra.mxu0 %v994
    %1521 = vmatmul.bf16.gmra.mxu0 %v298
    %v1522 = vpop.f32.mrf.mxu0
    %v1523 = vadd.f32 %v1510, %v1522
    %v1524 = vpop.f32.mrf.mxu0
    %1525 = vdwg.mxu0
    %1526 = vmatpush.bf16.msra.mxu0 %v1054
    %1527 = vmatpush.bf16.msra.mxu0 %v1050
    %1528 = vmatpush.bf16.msra.mxu0 %v1046
    %1529 = vmatpush.bf16.msra.mxu0 %v1042
    %1530 = vmatpush.bf16.msra.mxu0 %v1038
    %1531 = vmatpush.bf16.msra.mxu0 %v1034
    %1532 = vmatpush.bf16.msra.mxu0 %v1030
    %1533 = vmatpush.bf16.msra.mxu0 %v1026
    %1534 = vmatmul.bf16.gmra.mxu0 %v299
    %v1535 = vpop.f32.mrf.mxu0
    %v1536 = vadd.f32 %v1523, %v1535
    %v1537 = vpop.f32.mrf.mxu0
    %1538 = vdwg.mxu0
    %1539 = vmatpush.bf16.msra.mxu0 %v1086
    %1540 = vmatpush.bf16.msra.mxu0 %v1082
    %1541 = vmatpush.bf16.msra.mxu0 %v1078
    %1542 = vmatpush.bf16.msra.mxu0 %v1074
    %1543 = vmatpush.bf16.msra.mxu0 %v1070
    %1544 = vmatpush.bf16.msra.mxu0 %v1066
    %1545 = vmatpush.bf16.msra.mxu0 %v1062
    %1546 = vmatpush.bf16.msra.mxu0 %v1058
    %1547 = vmatmul.bf16.gmra.mxu0 %v300
    %v1548 = vpop.f32.mrf.mxu0
    %v1549 = vadd.f32 %v1536, %v1548
    %v1550 = vpop.f32.mrf.mxu0
    %1551 = vdwg.mxu0
    %1552 = vmatpush.bf16.msra.mxu0 0
    %1553 = vmatpush.bf16.msra.mxu0 0
    %1554 = vmatpush.bf16.msra.mxu0 0
    %1555 = vmatpush.bf16.msra.mxu0 0
    %1556 = vmatpush.bf16.msra.mxu0 0
    %1557 = vmatpush.bf16.msra.mxu0 0
    %1558 = vmatpush.bf16.msra.mxu0 0
    %1559 = vmatpush.bf16.msra.mxu0 %v1090
    %1560 = vmatmul.bf16.gmra.mxu0 %v1290
    %v1561 = vpop.f32.mrf.mxu0
    %v1562 = vadd.f32 %v1549, %v1561
    %v1563 = vpop.f32.mrf.mxu0
    %1564 = vdwg.mxu0
    %1565 = vmatpush.bf16.msra.mxu0 %v927
    %1566 = vmatpush.bf16.msra.mxu0 %v923
    %1567 = vmatpush.bf16.msra.mxu0 %v919
    %1568 = vmatpush.bf16.msra.mxu0 %v915
    %1569 = vmatpush.bf16.msra.mxu0 %v911
    %1570 = vmatpush.bf16.msra.mxu0 %v907
    %1571 = vmatpush.bf16.msra.mxu0 %v903
    %1572 = vmatpush.bf16.msra.mxu0 %v899
    %1573 = vmatmul.bf16.gmra.mxu0 %v295
    %v1574 = vpop.f32.mrf.mxu0
    %v1575 = vadd.f32 %v279, %v1574
    %v1576 = vpop.f32.mrf.mxu0
    %1577 = vdwg.mxu0
    %1578 = vmatpush.bf16.msra.mxu0 %v959
    %1579 = vmatpush.bf16.msra.mxu0 %v955
    %1580 = vmatpush.bf16.msra.mxu0 %v951
    %1581 = vmatpush.bf16.msra.mxu0 %v947
    %1582 = vmatpush.bf16.msra.mxu0 %v943
    %1583 = vmatpush.bf16.msra.mxu0 %v939
    %1584 = vmatpush.bf16.msra.mxu0 %v935
    %1585 = vmatpush.bf16.msra.mxu0 %v931
    %1586 = vmatmul.bf16.gmra.mxu0 %v296
    %v1587 = vpop.f32.mrf.mxu0
    %v1588 = vadd.f32 %v1575, %v1587
    %v1589 = vpop.f32.mrf.mxu0
    %1590 = vdwg.mxu0
    %1591 = vmatpush.bf16.msra.mxu0 %v991
    %1592 = vmatpush.bf16.msra.mxu0 %v987
    %1593 = vmatpush.bf16.msra.mxu0 %v983
    %1594 = vmatpush.bf16.msra.mxu0 %v979
    %1595 = vmatpush.bf16.msra.mxu0 %v975
    %1596 = vmatpush.bf16.msra.mxu0 %v971
    %1597 = vmatpush.bf16.msra.mxu0 %v967
    %1598 = vmatpush.bf16.msra.mxu0 %v963
    %1599 = vmatmul.bf16.gmra.mxu0 %v297
    %v1600 = vpop.f32.mrf.mxu0
    %v1601 = vadd.f32 %v1588, %v1600
    %v1602 = vpop.f32.mrf.mxu0
    %1603 = vdwg.mxu0
    %1604 = vmatpush.bf16.msra.mxu0 %v1023
    %1605 = vmatpush.bf16.msra.mxu0 %v1019
    %1606 = vmatpush.bf16.msra.mxu0 %v1015
    %1607 = vmatpush.bf16.msra.mxu0 %v1011
    %1608 = vmatpush.bf16.msra.mxu0 %v1007
    %1609 = vmatpush.bf16.msra.mxu0 %v1003
    %1610 = vmatpush.bf16.msra.mxu0 %v999
    %1611 = vmatpush.bf16.msra.mxu0 %v995
    %1612 = vmatmul.bf16.gmra.mxu0 %v298
    %v1613 = vpop.f32.mrf.mxu0
    %v1614 = vadd.f32 %v1601, %v1613
    %v1615 = vpop.f32.mrf.mxu0
    %1616 = vdwg.mxu0
    %1617 = vmatpush.bf16.msra.mxu0 %v1055
    %1618 = vmatpush.bf16.msra.mxu0 %v1051
    %1619 = vmatpush.bf16.msra.mxu0 %v1047
    %1620 = vmatpush.bf16.msra.mxu0 %v1043
    %1621 = vmatpush.bf16.msra.mxu0 %v1039
    %1622 = vmatpush.bf16.msra.mxu0 %v1035
    %1623 = vmatpush.bf16.msra.mxu0 %v1031
    %1624 = vmatpush.bf16.msra.mxu0 %v1027
    %1625 = vmatmul.bf16.gmra.mxu0 %v299
    %v1626 = vpop.f32.mrf.mxu0
    %v1627 = vadd.f32 %v1614, %v1626
    %v1628 = vpop.f32.mrf.mxu0
    %1629 = vdwg.mxu0
    %1630 = vmatpush.bf16.msra.mxu0 %v1087
    %1631 = vmatpush.bf16.msra.mxu0 %v1083
    %1632 = vmatpush.bf16.msra.mxu0 %v1079
    %1633 = vmatpush.bf16.msra.mxu0 %v1075
    %1634 = vmatpush.bf16.msra.mxu0 %v1071
    %1635 = vmatpush.bf16.msra.mxu0 %v1067
    %1636 = vmatpush.bf16.msra.mxu0 %v1063
    %1637 = vmatpush.bf16.msra.mxu0 %v1059
    %1638 = vmatmul.bf16.gmra.mxu0 %v300
    %v1639 = vpop.f32.mrf.mxu0
    %v1640 = vadd.f32 %v1627, %v1639
    %v1641 = vpop.f32.mrf.mxu0
    %1642 = vdwg.mxu0
    %1643 = vmatpush.bf16.msra.mxu0 0
    %1644 = vmatpush.bf16.msra.mxu0 0
    %1645 = vmatpush.bf16.msra.mxu0 0
    %1646 = vmatpush.bf16.msra.mxu0 0
    %1647 = vmatpush.bf16.msra.mxu0 0
    %1648 = vmatpush.bf16.msra.mxu0 0
    %1649 = vmatpush.bf16.msra.mxu0 0
    %1650 = vmatpush.bf16.msra.mxu0 %v1091
    %1651 = vmatmul.bf16.gmra.mxu0 %v1290
    %v1652 = vpop.f32.mrf.mxu0
    %v1653 = vadd.f32 %v1640, %v1652
    %v1654 = vpop.f32.mrf.mxu0
    %1655 = vdwg.mxu0
    %v1656 = vmax.f32 %v1380, 0.0
    %v1657 = vmax.f32 %v1471, 0.0
    %v1658 = vmax.f32 %v1562, 0.0
    %v1659 = vmax.f32 %v1653, 0.0
    %v1660 = vpack.c.bf16 %v1656, %v1656
    %v1661 = vpack.c.bf16 %v1657, %v1657
    %v1662 = vpack.c.bf16 %v1658, %v1658
    %v1663 = vpack.c.bf16 %v1659, %v1659
    %v1664 = vld [vmem:[#allocation4] sm:$0xff]
    %v1665 = vld [vmem:[#allocation4 + $0x8] sm:$0xff]
    %v1666 = vld [vmem:[#allocation4 + $0x10] sm:$0xff]
    %v1667 = vld [vmem:[#allocation4 + $0x18] sm:$0xff]
    %v1668 = vld [vmem:[#allocation4 + $0x20] sm:$0xff]
    %v1669 = vld [vmem:[#allocation4 + $0x28] sm:$0xff]
    %v1670 = vld [vmem:[#allocation4 + $0x30] sm:$0xff]
    %v1671 = vld [vmem:[#allocation4 + $0x38] sm:$0xff]
    %v1672 = vld [vmem:[#allocation4 + $0x40] sm:$0xff]
    %v1673 = vld [vmem:[#allocation4 + $0x48] sm:$0xff]
    %v1674 = vld [vmem:[#allocation4 + $0x50] sm:$0xff]
    %v1675 = vld [vmem:[#allocation4 + $0x58] sm:$0xff]
    %v1676 = vld [vmem:[#allocation4 + $0x60] sm:$0xff]
    %v1677 = vld [vmem:[#allocation4 + $0x68] sm:$0xff]
    %v1678 = vld [vmem:[#allocation4 + $0x70] sm:$0xff]
    %v1679 = vld [vmem:[#allocation4 + $0x78] sm:$0xff]
    %v1680 = vld [vmem:[#allocation4 + $0x80] sm:$0xff]
    %v1681 = vld [vmem:[#allocation4 + $0x88] sm:$0xff]
    %v1682 = vld [vmem:[#allocation4 + $0x90] sm:$0xff]
    %v1683 = vld [vmem:[#allocation4 + $0x98] sm:$0xff]
    %v1684 = vld [vmem:[#allocation4 + $0xa0] sm:$0xff]
    %v1685 = vld [vmem:[#allocation4 + $0xa8] sm:$0xff]
    %v1686 = vld [vmem:[#allocation4 + $0xb0] sm:$0xff]
    %v1687 = vld [vmem:[#allocation4 + $0xb8] sm:$0xff]
    %v1688 = vld [vmem:[#allocation4 + $0xc0] sm:$0xff]
    %v1689 = vld [vmem:[#allocation4 + $0xc8] sm:$0xff]
    %v1690 = vld [vmem:[#allocation4 + $0xd0] sm:$0xff]
    %v1691 = vld [vmem:[#allocation4 + $0xd8] sm:$0xff]
    %v1692 = vld [vmem:[#allocation4 + $0xe0] sm:$0xff]
    %v1693 = vld [vmem:[#allocation4 + $0xe8] sm:$0xff]
    %v1694 = vld [vmem:[#allocation4 + $0xf0] sm:$0xff]
    %v1695 = vld [vmem:[#allocation4 + $0xf8] sm:$0xff]
    %v1696 = vld [vmem:[#allocation4 + $0x100] sm:$0xff]
    %v1697 = vld [vmem:[#allocation4 + $0x108] sm:$0xff]
    %v1698 = vld [vmem:[#allocation4 + $0x110] sm:$0xff]
    %v1699 = vld [vmem:[#allocation4 + $0x118] sm:$0xff]
    %v1700 = vld [vmem:[#allocation4 + $0x120] sm:$0xff]
    %v1701 = vld [vmem:[#allocation4 + $0x128] sm:$0xff]
    %v1702 = vld [vmem:[#allocation4 + $0x130] sm:$0xff]
    %v1703 = vld [vmem:[#allocation4 + $0x138] sm:$0xff]
    %v1704 = vld [vmem:[#allocation4 + $0x140] sm:$0xff]
    %v1705 = vld [vmem:[#allocation4 + $0x148] sm:$0xff]
    %v1706 = vld [vmem:[#allocation4 + $0x150] sm:$0xff]
    %v1707 = vld [vmem:[#allocation4 + $0x158] sm:$0xff]
    %v1708 = vld [vmem:[#allocation4 + $0x160] sm:$0xff]
    %v1709 = vld [vmem:[#allocation4 + $0x168] sm:$0xff]
    %v1710 = vld [vmem:[#allocation4 + $0x170] sm:$0xff]
    %v1711 = vld [vmem:[#allocation4 + $0x178] sm:$0xff]
    %v1712 = vld [vmem:[#allocation4 + $0x180] sm:$0xff]
    %v1713 = vld [vmem:[#allocation4 + $0x188] sm:$0xff]
    %v1714 = vld [vmem:[#allocation4 + $0x190] sm:$0xff]
    %v1715 = vld [vmem:[#allocation4 + $0x198] sm:$0xff]
    %v1716 = vld [vmem:[#allocation4 + $0x1a0] sm:$0xff]
    %v1717 = vld [vmem:[#allocation4 + $0x1a8] sm:$0xff]
    %v1718 = vld [vmem:[#allocation4 + $0x1b0] sm:$0xff]
    %v1719 = vld [vmem:[#allocation4 + $0x1b8] sm:$0xff]
    %v1720 = vld [vmem:[#allocation4 + $0x1c0] sm:$0xff]
    %v1721 = vld [vmem:[#allocation4 + $0x1c8] sm:$0xff]
    %v1722 = vld [vmem:[#allocation4 + $0x1d0] sm:$0xff]
    %v1723 = vld [vmem:[#allocation4 + $0x1d8] sm:$0xff]
    %v1724 = vld [vmem:[#allocation4 + $0x1e0] sm:$0xff]
    %v1725 = vld [vmem:[#allocation4 + $0x1e8] sm:$0xff]
    %v1726 = vld [vmem:[#allocation4 + $0x1f0] sm:$0xff]
    %v1727 = vld [vmem:[#allocation4 + $0x1f8] sm:$0xff]
    %v1728 = vld [vmem:[#allocation4 + $0x200] sm:$0xff]
    %v1729 = vld [vmem:[#allocation4 + $0x208] sm:$0xff]
    %v1730 = vld [vmem:[#allocation4 + $0x210] sm:$0xff]
    %v1731 = vld [vmem:[#allocation4 + $0x218] sm:$0xff]
    %v1732 = vld [vmem:[#allocation4 + $0x220] sm:$0xff]
    %v1733 = vld [vmem:[#allocation4 + $0x228] sm:$0xff]
    %v1734 = vld [vmem:[#allocation4 + $0x230] sm:$0xff]
    %v1735 = vld [vmem:[#allocation4 + $0x238] sm:$0xff]
    %v1736 = vld [vmem:[#allocation4 + $0x240] sm:$0xff]
    %v1737 = vld [vmem:[#allocation4 + $0x248] sm:$0xff]
    %v1738 = vld [vmem:[#allocation4 + $0x250] sm:$0xff]
    %v1739 = vld [vmem:[#allocation4 + $0x258] sm:$0xff]
    %v1740 = vld [vmem:[#allocation4 + $0x260] sm:$0xff]
    %v1741 = vld [vmem:[#allocation4 + $0x268] sm:$0xff]
    %v1742 = vld [vmem:[#allocation4 + $0x270] sm:$0xff]
    %v1743 = vld [vmem:[#allocation4 + $0x278] sm:$0xff]
    %v1744 = vld [vmem:[#allocation4 + $0x280] sm:$0xff]
    %v1745 = vld [vmem:[#allocation4 + $0x288] sm:$0xff]
    %v1746 = vld [vmem:[#allocation4 + $0x290] sm:$0xff]
    %v1747 = vld [vmem:[#allocation4 + $0x298] sm:$0xff]
    %v1748 = vld [vmem:[#allocation4 + $0x2a0] sm:$0xff]
    %v1749 = vld [vmem:[#allocation4 + $0x2a8] sm:$0xff]
    %v1750 = vld [vmem:[#allocation4 + $0x2b0] sm:$0xff]
    %v1751 = vld [vmem:[#allocation4 + $0x2b8] sm:$0xff]
    %v1752 = vld [vmem:[#allocation4 + $0x2c0] sm:$0xff]
    %v1753 = vld [vmem:[#allocation4 + $0x2c8] sm:$0xff]
    %v1754 = vld [vmem:[#allocation4 + $0x2d0] sm:$0xff]
    %v1755 = vld [vmem:[#allocation4 + $0x2d8] sm:$0xff]
    %v1756 = vld [vmem:[#allocation4 + $0x2e0] sm:$0xff]
    %v1757 = vld [vmem:[#allocation4 + $0x2e8] sm:$0xff]
    %v1758 = vld [vmem:[#allocation4 + $0x2f0] sm:$0xff]
    %v1759 = vld [vmem:[#allocation4 + $0x2f8] sm:$0xff]
    %v1760 = vld [vmem:[#allocation4 + $0x300] sm:$0xff]
    %v1761 = vld [vmem:[#allocation4 + $0x308] sm:$0xff]
    %v1762 = vld [vmem:[#allocation4 + $0x310] sm:$0xff]
    %v1763 = vld [vmem:[#allocation4 + $0x318] sm:$0xff]
    %v1764 = vld [vmem:[#allocation4 + $0x320] sm:$0xff]
    %v1765 = vld [vmem:[#allocation4 + $0x328] sm:$0xff]
    %v1766 = vld [vmem:[#allocation4 + $0x330] sm:$0xff]
    %v1767 = vld [vmem:[#allocation4 + $0x338] sm:$0xff]
    %v1768 = vld [vmem:[#allocation4 + $0x340] sm:$0xff]
    %v1769 = vld [vmem:[#allocation4 + $0x348] sm:$0xff]
    %v1770 = vld [vmem:[#allocation4 + $0x350] sm:$0xff]
    %v1771 = vld [vmem:[#allocation4 + $0x358] sm:$0xff]
    %v1772 = vld [vmem:[#allocation4 + $0x360] sm:$0xff]
    %v1773 = vld [vmem:[#allocation4 + $0x368] sm:$0xff]
    %v1774 = vld [vmem:[#allocation4 + $0x370] sm:$0xff]
    %v1775 = vld [vmem:[#allocation4 + $0x378] sm:$0xff]
    %v1776 = vld [vmem:[#allocation4 + $0x380] sm:$0xff]
    %v1777 = vld [vmem:[#allocation4 + $0x388] sm:$0xff]
    %v1778 = vld [vmem:[#allocation4 + $0x390] sm:$0xff]
    %v1779 = vld [vmem:[#allocation4 + $0x398] sm:$0xff]
    %v1780 = vld [vmem:[#allocation4 + $0x3a0] sm:$0xff]
    %v1781 = vld [vmem:[#allocation4 + $0x3a8] sm:$0xff]
    %v1782 = vld [vmem:[#allocation4 + $0x3b0] sm:$0xff]
    %v1783 = vld [vmem:[#allocation4 + $0x3b8] sm:$0xff]
    %v1784 = vld [vmem:[#allocation4 + $0x3c0] sm:$0xff]
    %v1785 = vld [vmem:[#allocation4 + $0x3c8] sm:$0xff]
    %v1786 = vld [vmem:[#allocation4 + $0x3d0] sm:$0xff]
    %v1787 = vld [vmem:[#allocation4 + $0x3d8] sm:$0xff]
    %v1788 = vld [vmem:[#allocation4 + $0x3e0] sm:$0xff]
    %v1789 = vld [vmem:[#allocation4 + $0x3e8] sm:$0xff]
    %v1790 = vld [vmem:[#allocation4 + $0x3f0] sm:$0xff]
    %v1791 = vld [vmem:[#allocation4 + $0x3f8] sm:$0xff]
    %v1792 = vld [vmem:[%s4] sm:$0xf]
    %v1794 = vperm.slane %v1792, 0
    %v1795 = vperm.slane %v1792, 1
    %v1796 = vperm.slane %v1792, 2
    %v1797 = vperm.slane %v1792, 3
    %v1930 = vunpack.c.l.b16 %v1664
    %v1931 = vunpack.c.h.b16 %v1664
    %v1932 = vunpack.c.l.b16 %v1665
    %v1933 = vunpack.c.h.b16 %v1665
    %v1934 = vunpack.c.l.b16 %v1666
    %v1935 = vunpack.c.h.b16 %v1666
    %v1936 = vunpack.c.l.b16 %v1667
    %v1937 = vunpack.c.h.b16 %v1667
    %v1938 = vunpack.c.l.b16 %v1668
    %v1939 = vunpack.c.h.b16 %v1668
    %v1940 = vunpack.c.l.b16 %v1669
    %v1941 = vunpack.c.h.b16 %v1669
    %v1942 = vunpack.c.l.b16 %v1670
    %v1943 = vunpack.c.h.b16 %v1670
    %v1944 = vunpack.c.l.b16 %v1671
    %v1945 = vunpack.c.h.b16 %v1671
    %v1946 = vunpack.c.l.b16 %v1672
    %v1947 = vunpack.c.h.b16 %v1672
    %v1948 = vunpack.c.l.b16 %v1673
    %v1949 = vunpack.c.h.b16 %v1673
    %v1950 = vunpack.c.l.b16 %v1674
    %v1951 = vunpack.c.h.b16 %v1674
    %v1952 = vunpack.c.l.b16 %v1675
    %v1953 = vunpack.c.h.b16 %v1675
    %v1954 = vunpack.c.l.b16 %v1676
    %v1955 = vunpack.c.h.b16 %v1676
    %v1956 = vunpack.c.l.b16 %v1677
    %v1957 = vunpack.c.h.b16 %v1677
    %v1958 = vunpack.c.l.b16 %v1678
    %v1959 = vunpack.c.h.b16 %v1678
    %v1960 = vunpack.c.l.b16 %v1679
    %v1961 = vunpack.c.h.b16 %v1679
    %v1962 = vunpack.c.l.b16 %v1680
    %v1963 = vunpack.c.h.b16 %v1680
    %v1964 = vunpack.c.l.b16 %v1681
    %v1965 = vunpack.c.h.b16 %v1681
    %v1966 = vunpack.c.l.b16 %v1682
    %v1967 = vunpack.c.h.b16 %v1682
    %v1968 = vunpack.c.l.b16 %v1683
    %v1969 = vunpack.c.h.b16 %v1683
    %v1970 = vunpack.c.l.b16 %v1684
    %v1971 = vunpack.c.h.b16 %v1684
    %v1972 = vunpack.c.l.b16 %v1685
    %v1973 = vunpack.c.h.b16 %v1685
    %v1974 = vunpack.c.l.b16 %v1686
    %v1975 = vunpack.c.h.b16 %v1686
    %v1976 = vunpack.c.l.b16 %v1687
    %v1977 = vunpack.c.h.b16 %v1687
    %v1978 = vunpack.c.l.b16 %v1688
    %v1979 = vunpack.c.h.b16 %v1688
    %v1980 = vunpack.c.l.b16 %v1689
    %v1981 = vunpack.c.h.b16 %v1689
    %v1982 = vunpack.c.l.b16 %v1690
    %v1983 = vunpack.c.h.b16 %v1690
    %v1984 = vunpack.c.l.b16 %v1691
    %v1985 = vunpack.c.h.b16 %v1691
    %v1986 = vunpack.c.l.b16 %v1692
    %v1987 = vunpack.c.h.b16 %v1692
    %v1988 = vunpack.c.l.b16 %v1693
    %v1989 = vunpack.c.h.b16 %v1693
    %v1990 = vunpack.c.l.b16 %v1694
    %v1991 = vunpack.c.h.b16 %v1694
    %v1992 = vunpack.c.l.b16 %v1695
    %v1993 = vunpack.c.h.b16 %v1695
    %v1994 = vunpack.c.l.b16 %v1696
    %v1995 = vunpack.c.h.b16 %v1696
    %v1996 = vunpack.c.l.b16 %v1697
    %v1997 = vunpack.c.h.b16 %v1697
    %v1998 = vunpack.c.l.b16 %v1698
    %v1999 = vunpack.c.h.b16 %v1698
    %v2000 = vunpack.c.l.b16 %v1699
    %v2001 = vunpack.c.h.b16 %v1699
    %v2002 = vunpack.c.l.b16 %v1700
    %v2003 = vunpack.c.h.b16 %v1700
    %v2004 = vunpack.c.l.b16 %v1701
    %v2005 = vunpack.c.h.b16 %v1701
    %v2006 = vunpack.c.l.b16 %v1702
    %v2007 = vunpack.c.h.b16 %v1702
    %v2008 = vunpack.c.l.b16 %v1703
    %v2009 = vunpack.c.h.b16 %v1703
    %v2010 = vunpack.c.l.b16 %v1704
    %v2011 = vunpack.c.h.b16 %v1704
    %v2012 = vunpack.c.l.b16 %v1705
    %v2013 = vunpack.c.h.b16 %v1705
    %v2014 = vunpack.c.l.b16 %v1706
    %v2015 = vunpack.c.h.b16 %v1706
    %v2016 = vunpack.c.l.b16 %v1707
    %v2017 = vunpack.c.h.b16 %v1707
    %v2018 = vunpack.c.l.b16 %v1708
    %v2019 = vunpack.c.h.b16 %v1708
    %v2020 = vunpack.c.l.b16 %v1709
    %v2021 = vunpack.c.h.b16 %v1709
    %v2022 = vunpack.c.l.b16 %v1710
    %v2023 = vunpack.c.h.b16 %v1710
    %v2024 = vunpack.c.l.b16 %v1711
    %v2025 = vunpack.c.h.b16 %v1711
    %v2026 = vunpack.c.l.b16 %v1712
    %v2027 = vunpack.c.h.b16 %v1712
    %v2028 = vunpack.c.l.b16 %v1713
    %v2029 = vunpack.c.h.b16 %v1713
    %v2030 = vunpack.c.l.b16 %v1714
    %v2031 = vunpack.c.h.b16 %v1714
    %v2032 = vunpack.c.l.b16 %v1715
    %v2033 = vunpack.c.h.b16 %v1715
    %v2034 = vunpack.c.l.b16 %v1716
    %v2035 = vunpack.c.h.b16 %v1716
    %v2036 = vunpack.c.l.b16 %v1717
    %v2037 = vunpack.c.h.b16 %v1717
    %v2038 = vunpack.c.l.b16 %v1718
    %v2039 = vunpack.c.h.b16 %v1718
    %v2040 = vunpack.c.l.b16 %v1719
    %v2041 = vunpack.c.h.b16 %v1719
    %v2042 = vunpack.c.l.b16 %v1720
    %v2043 = vunpack.c.h.b16 %v1720
    %v2044 = vunpack.c.l.b16 %v1721
    %v2045 = vunpack.c.h.b16 %v1721
    %v2046 = vunpack.c.l.b16 %v1722
    %v2047 = vunpack.c.h.b16 %v1722
    %v2048 = vunpack.c.l.b16 %v1723
    %v2049 = vunpack.c.h.b16 %v1723
    %v2050 = vunpack.c.l.b16 %v1724
    %v2051 = vunpack.c.h.b16 %v1724
    %v2052 = vunpack.c.l.b16 %v1725
    %v2053 = vunpack.c.h.b16 %v1725
    %v2054 = vunpack.c.l.b16 %v1726
    %v2055 = vunpack.c.h.b16 %v1726
    %v2056 = vunpack.c.l.b16 %v1727
    %v2057 = vunpack.c.h.b16 %v1727
    %v2058 = vunpack.c.l.b16 %v1728
    %v2059 = vunpack.c.h.b16 %v1728
    %v2060 = vunpack.c.l.b16 %v1729
    %v2061 = vunpack.c.h.b16 %v1729
    %v2062 = vunpack.c.l.b16 %v1730
    %v2063 = vunpack.c.h.b16 %v1730
    %v2064 = vunpack.c.l.b16 %v1731
    %v2065 = vunpack.c.h.b16 %v1731
    %v2066 = vunpack.c.l.b16 %v1732
    %v2067 = vunpack.c.h.b16 %v1732
    %v2068 = vunpack.c.l.b16 %v1733
    %v2069 = vunpack.c.h.b16 %v1733
    %v2070 = vunpack.c.l.b16 %v1734
    %v2071 = vunpack.c.h.b16 %v1734
    %v2072 = vunpack.c.l.b16 %v1735
    %v2073 = vunpack.c.h.b16 %v1735
    %v2074 = vunpack.c.l.b16 %v1736
    %v2075 = vunpack.c.h.b16 %v1736
    %v2076 = vunpack.c.l.b16 %v1737
    %v2077 = vunpack.c.h.b16 %v1737
    %v2078 = vunpack.c.l.b16 %v1738
    %v2079 = vunpack.c.h.b16 %v1738
    %v2080 = vunpack.c.l.b16 %v1739
    %v2081 = vunpack.c.h.b16 %v1739
    %v2082 = vunpack.c.l.b16 %v1740
    %v2083 = vunpack.c.h.b16 %v1740
    %v2084 = vunpack.c.l.b16 %v1741
    %v2085 = vunpack.c.h.b16 %v1741
    %v2086 = vunpack.c.l.b16 %v1742
    %v2087 = vunpack.c.h.b16 %v1742
    %v2088 = vunpack.c.l.b16 %v1743
    %v2089 = vunpack.c.h.b16 %v1743
    %v2090 = vunpack.c.l.b16 %v1744
    %v2091 = vunpack.c.h.b16 %v1744
    %v2092 = vunpack.c.l.b16 %v1745
    %v2093 = vunpack.c.h.b16 %v1745
    %v2094 = vunpack.c.l.b16 %v1746
    %v2095 = vunpack.c.h.b16 %v1746
    %v2096 = vunpack.c.l.b16 %v1747
    %v2097 = vunpack.c.h.b16 %v1747
    %v2098 = vunpack.c.l.b16 %v1748
    %v2099 = vunpack.c.h.b16 %v1748
    %v2100 = vunpack.c.l.b16 %v1749
    %v2101 = vunpack.c.h.b16 %v1749
    %v2102 = vunpack.c.l.b16 %v1750
    %v2103 = vunpack.c.h.b16 %v1750
    %v2104 = vunpack.c.l.b16 %v1751
    %v2105 = vunpack.c.h.b16 %v1751
    %v2106 = vunpack.c.l.b16 %v1752
    %v2107 = vunpack.c.h.b16 %v1752
    %v2108 = vunpack.c.l.b16 %v1753
    %v2109 = vunpack.c.h.b16 %v1753
    %v2110 = vunpack.c.l.b16 %v1754
    %v2111 = vunpack.c.h.b16 %v1754
    %v2112 = vunpack.c.l.b16 %v1755
    %v2113 = vunpack.c.h.b16 %v1755
    %v2114 = vunpack.c.l.b16 %v1756
    %v2115 = vunpack.c.h.b16 %v1756
    %v2116 = vunpack.c.l.b16 %v1757
    %v2117 = vunpack.c.h.b16 %v1757
    %v2118 = vunpack.c.l.b16 %v1758
    %v2119 = vunpack.c.h.b16 %v1758
    %v2120 = vunpack.c.l.b16 %v1759
    %v2121 = vunpack.c.h.b16 %v1759
    %v2122 = vunpack.c.l.b16 %v1760
    %v2123 = vunpack.c.h.b16 %v1760
    %v2124 = vunpack.c.l.b16 %v1761
    %v2125 = vunpack.c.h.b16 %v1761
    %v2126 = vunpack.c.l.b16 %v1762
    %v2127 = vunpack.c.h.b16 %v1762
    %v2128 = vunpack.c.l.b16 %v1763
    %v2129 = vunpack.c.h.b16 %v1763
    %v2130 = vunpack.c.l.b16 %v1764
    %v2131 = vunpack.c.h.b16 %v1764
    %v2132 = vunpack.c.l.b16 %v1765
    %v2133 = vunpack.c.h.b16 %v1765
    %v2134 = vunpack.c.l.b16 %v1766
    %v2135 = vunpack.c.h.b16 %v1766
    %v2136 = vunpack.c.l.b16 %v1767
    %v2137 = vunpack.c.h.b16 %v1767
    %v2138 = vunpack.c.l.b16 %v1768
    %v2139 = vunpack.c.h.b16 %v1768
    %v2140 = vunpack.c.l.b16 %v1769
    %v2141 = vunpack.c.h.b16 %v1769
    %v2142 = vunpack.c.l.b16 %v1770
    %v2143 = vunpack.c.h.b16 %v1770
    %v2144 = vunpack.c.l.b16 %v1771
    %v2145 = vunpack.c.h.b16 %v1771
    %v2146 = vunpack.c.l.b16 %v1772
    %v2147 = vunpack.c.h.b16 %v1772
    %v2148 = vunpack.c.l.b16 %v1773
    %v2149 = vunpack.c.h.b16 %v1773
    %v2150 = vunpack.c.l.b16 %v1774
    %v2151 = vunpack.c.h.b16 %v1774
    %v2152 = vunpack.c.l.b16 %v1775
    %v2153 = vunpack.c.h.b16 %v1775
    %v2154 = vunpack.c.l.b16 %v1776
    %v2155 = vunpack.c.h.b16 %v1776
    %v2156 = vunpack.c.l.b16 %v1777
    %v2157 = vunpack.c.h.b16 %v1777
    %v2158 = vunpack.c.l.b16 %v1778
    %v2159 = vunpack.c.h.b16 %v1778
    %v2160 = vunpack.c.l.b16 %v1779
    %v2161 = vunpack.c.h.b16 %v1779
    %v2162 = vunpack.c.l.b16 %v1780
    %v2163 = vunpack.c.h.b16 %v1780
    %v2164 = vunpack.c.l.b16 %v1781
    %v2165 = vunpack.c.h.b16 %v1781
    %v2166 = vunpack.c.l.b16 %v1782
    %v2167 = vunpack.c.h.b16 %v1782
    %v2168 = vunpack.c.l.b16 %v1783
    %v2169 = vunpack.c.h.b16 %v1783
    %v2170 = vunpack.c.l.b16 %v1784
    %v2171 = vunpack.c.h.b16 %v1784
    %v2172 = vunpack.c.l.b16 %v1785
    %v2173 = vunpack.c.h.b16 %v1785
    %v2174 = vunpack.c.l.b16 %v1786
    %v2175 = vunpack.c.h.b16 %v1786
    %v2176 = vunpack.c.l.b16 %v1787
    %v2177 = vunpack.c.h.b16 %v1787
    %v2178 = vunpack.c.l.b16 %v1788
    %v2179 = vunpack.c.h.b16 %v1788
    %v2180 = vunpack.c.l.b16 %v1789
    %v2181 = vunpack.c.h.b16 %v1789
    %v2182 = vunpack.c.l.b16 %v1790
    %v2183 = vunpack.c.h.b16 %v1790
    %v2184 = vunpack.c.l.b16 %v1791
    %v2185 = vunpack.c.h.b16 %v1791
    %v2186 = vpack.c.b16 %v1934, %v1930
    %v2187 = vpack.c.b16 %v1935, %v1931
    %v2188 = vpack.c.b16 %v1936, %v1932
    %v2189 = vpack.c.b16 %v1937, %v1933
    %v2190 = vpack.c.b16 %v1942, %v1938
    %v2191 = vpack.c.b16 %v1943, %v1939
    %v2192 = vpack.c.b16 %v1944, %v1940
    %v2193 = vpack.c.b16 %v1945, %v1941
    %v2194 = vpack.c.b16 %v1950, %v1946
    %v2195 = vpack.c.b16 %v1951, %v1947
    %v2196 = vpack.c.b16 %v1952, %v1948
    %v2197 = vpack.c.b16 %v1953, %v1949
    %v2198 = vpack.c.b16 %v1958, %v1954
    %v2199 = vpack.c.b16 %v1959, %v1955
    %v2200 = vpack.c.b16 %v1960, %v1956
    %v2201 = vpack.c.b16 %v1961, %v1957
    %v2202 = vpack.c.b16 %v1966, %v1962
    %v2203 = vpack.c.b16 %v1967, %v1963
    %v2204 = vpack.c.b16 %v1968, %v1964
    %v2205 = vpack.c.b16 %v1969, %v1965
    %v2206 = vpack.c.b16 %v1974, %v1970
    %v2207 = vpack.c.b16 %v1975, %v1971
    %v2208 = vpack.c.b16 %v1976, %v1972
    %v2209 = vpack.c.b16 %v1977, %v1973
    %v2210 = vpack.c.b16 %v1982, %v1978
    %v2211 = vpack.c.b16 %v1983, %v1979
    %v2212 = vpack.c.b16 %v1984, %v1980
    %v2213 = vpack.c.b16 %v1985, %v1981
    %v2214 = vpack.c.b16 %v1990, %v1986
    %v2215 = vpack.c.b16 %v1991, %v1987
    %v2216 = vpack.c.b16 %v1992, %v1988
    %v2217 = vpack.c.b16 %v1993, %v1989
    %v2218 = vpack.c.b16 %v1998, %v1994
    %v2219 = vpack.c.b16 %v1999, %v1995
    %v2220 = vpack.c.b16 %v2000, %v1996
    %v2221 = vpack.c.b16 %v2001, %v1997
    %v2222 = vpack.c.b16 %v2006, %v2002
    %v2223 = vpack.c.b16 %v2007, %v2003
    %v2224 = vpack.c.b16 %v2008, %v2004
    %v2225 = vpack.c.b16 %v2009, %v2005
    %v2226 = vpack.c.b16 %v2014, %v2010
    %v2227 = vpack.c.b16 %v2015, %v2011
    %v2228 = vpack.c.b16 %v2016, %v2012
    %v2229 = vpack.c.b16 %v2017, %v2013
    %v2230 = vpack.c.b16 %v2022, %v2018
    %v2231 = vpack.c.b16 %v2023, %v2019
    %v2232 = vpack.c.b16 %v2024, %v2020
    %v2233 = vpack.c.b16 %v2025, %v2021
    %v2234 = vpack.c.b16 %v2030, %v2026
    %v2235 = vpack.c.b16 %v2031, %v2027
    %v2236 = vpack.c.b16 %v2032, %v2028
    %v2237 = vpack.c.b16 %v2033, %v2029
    %v2238 = vpack.c.b16 %v2038, %v2034
    %v2239 = vpack.c.b16 %v2039, %v2035
    %v2240 = vpack.c.b16 %v2040, %v2036
    %v2241 = vpack.c.b16 %v2041, %v2037
    %v2242 = vpack.c.b16 %v2046, %v2042
    %v2243 = vpack.c.b16 %v2047, %v2043
    %v2244 = vpack.c.b16 %v2048, %v2044
    %v2245 = vpack.c.b16 %v2049, %v2045
    %v2246 = vpack.c.b16 %v2054, %v2050
    %v2247 = vpack.c.b16 %v2055, %v2051
    %v2248 = vpack.c.b16 %v2056, %v2052
    %v2249 = vpack.c.b16 %v2057, %v2053
    %v2250 = vpack.c.b16 %v2062, %v2058
    %v2251 = vpack.c.b16 %v2063, %v2059
    %v2252 = vpack.c.b16 %v2064, %v2060
    %v2253 = vpack.c.b16 %v2065, %v2061
    %v2254 = vpack.c.b16 %v2070, %v2066
    %v2255 = vpack.c.b16 %v2071, %v2067
    %v2256 = vpack.c.b16 %v2072, %v2068
    %v2257 = vpack.c.b16 %v2073, %v2069
    %v2258 = vpack.c.b16 %v2078, %v2074
    %v2259 = vpack.c.b16 %v2079, %v2075
    %v2260 = vpack.c.b16 %v2080, %v2076
    %v2261 = vpack.c.b16 %v2081, %v2077
    %v2262 = vpack.c.b16 %v2086, %v2082
    %v2263 = vpack.c.b16 %v2087, %v2083
    %v2264 = vpack.c.b16 %v2088, %v2084
    %v2265 = vpack.c.b16 %v2089, %v2085
    %v2266 = vpack.c.b16 %v2094, %v2090
    %v2267 = vpack.c.b16 %v2095, %v2091
    %v2268 = vpack.c.b16 %v2096, %v2092
    %v2269 = vpack.c.b16 %v2097, %v2093
    %v2270 = vpack.c.b16 %v2102, %v2098
    %v2271 = vpack.c.b16 %v2103, %v2099
    %v2272 = vpack.c.b16 %v2104, %v2100
    %v2273 = vpack.c.b16 %v2105, %v2101
    %v2274 = vpack.c.b16 %v2110, %v2106
    %v2275 = vpack.c.b16 %v2111, %v2107
    %v2276 = vpack.c.b16 %v2112, %v2108
    %v2277 = vpack.c.b16 %v2113, %v2109
    %v2278 = vpack.c.b16 %v2118, %v2114
    %v2279 = vpack.c.b16 %v2119, %v2115
    %v2280 = vpack.c.b16 %v2120, %v2116
    %v2281 = vpack.c.b16 %v2121, %v2117
    %v2282 = vpack.c.b16 %v2126, %v2122
    %v2283 = vpack.c.b16 %v2127, %v2123
    %v2284 = vpack.c.b16 %v2128, %v2124
    %v2285 = vpack.c.b16 %v2129, %v2125
    %v2286 = vpack.c.b16 %v2134, %v2130
    %v2287 = vpack.c.b16 %v2135, %v2131
    %v2288 = vpack.c.b16 %v2136, %v2132
    %v2289 = vpack.c.b16 %v2137, %v2133
    %v2290 = vpack.c.b16 %v2142, %v2138
    %v2291 = vpack.c.b16 %v2143, %v2139
    %v2292 = vpack.c.b16 %v2144, %v2140
    %v2293 = vpack.c.b16 %v2145, %v2141
    %v2294 = vpack.c.b16 %v2150, %v2146
    %v2295 = vpack.c.b16 %v2151, %v2147
    %v2296 = vpack.c.b16 %v2152, %v2148
    %v2297 = vpack.c.b16 %v2153, %v2149
    %v2298 = vpack.c.b16 %v2158, %v2154
    %v2299 = vpack.c.b16 %v2159, %v2155
    %v2300 = vpack.c.b16 %v2160, %v2156
    %v2301 = vpack.c.b16 %v2161, %v2157
    %v2302 = vpack.c.b16 %v2166, %v2162
    %v2303 = vpack.c.b16 %v2167, %v2163
    %v2304 = vpack.c.b16 %v2168, %v2164
    %v2305 = vpack.c.b16 %v2169, %v2165
    %v2306 = vpack.c.b16 %v2174, %v2170
    %v2307 = vpack.c.b16 %v2175, %v2171
    %v2308 = vpack.c.b16 %v2176, %v2172
    %v2309 = vpack.c.b16 %v2177, %v2173
    %v2310 = vpack.c.b16 %v2182, %v2178
    %v2311 = vpack.c.b16 %v2183, %v2179
    %v2312 = vpack.c.b16 %v2184, %v2180
    %v2313 = vpack.c.b16 %v2185, %v2181
    %2442 = vmatpush.bf16.msra.mxu0 %v2214
    %2443 = vmatpush.bf16.msra.mxu0 %v2210
    %2444 = vmatpush.bf16.msra.mxu0 %v2206
    %2445 = vmatpush.bf16.msra.mxu0 %v2202
    %2446 = vmatpush.bf16.msra.mxu0 %v2198
    %2447 = vmatpush.bf16.msra.mxu0 %v2194
    %2448 = vmatpush.bf16.msra.mxu0 %v2190
    %2449 = vmatpush.bf16.msra.mxu0 %v2186
    %2450 = vmatmul.bf16.gmra.mxu0 %v1660
    %v2451 = vpop.f32.mrf.mxu0
    %v2452 = vadd.f32 %v1794, %v2451
    %v2453 = vpop.f32.mrf.mxu0
    %2454 = vdwg.mxu0
    %2455 = vmatpush.bf16.msra.mxu0 %v2246
    %2456 = vmatpush.bf16.msra.mxu0 %v2242
    %2457 = vmatpush.bf16.msra.mxu0 %v2238
    %2458 = vmatpush.bf16.msra.mxu0 %v2234
    %2459 = vmatpush.bf16.msra.mxu0 %v2230
    %2460 = vmatpush.bf16.msra.mxu0 %v2226
    %2461 = vmatpush.bf16.msra.mxu0 %v2222
    %2462 = vmatpush.bf16.msra.mxu0 %v2218
    %2463 = vmatmul.bf16.gmra.mxu0 %v1661
    %v2464 = vpop.f32.mrf.mxu0
    %v2465 = vadd.f32 %v2452, %v2464
    %v2466 = vpop.f32.mrf.mxu0
    %2467 = vdwg.mxu0
    %2468 = vmatpush.bf16.msra.mxu0 %v2278
    %2469 = vmatpush.bf16.msra.mxu0 %v2274
    %2470 = vmatpush.bf16.msra.mxu0 %v2270
    %2471 = vmatpush.bf16.msra.mxu0 %v2266
    %2472 = vmatpush.bf16.msra.mxu0 %v2262
    %2473 = vmatpush.bf16.msra.mxu0 %v2258
    %2474 = vmatpush.bf16.msra.mxu0 %v2254
    %2475 = vmatpush.bf16.msra.mxu0 %v2250
    %2476 = vmatmul.bf16.gmra.mxu0 %v1662
    %v2477 = vpop.f32.mrf.mxu0
    %v2478 = vadd.f32 %v2465, %v2477
    %v2479 = vpop.f32.mrf.mxu0
    %2480 = vdwg.mxu0
    %2481 = vmatpush.bf16.msra.mxu0 %v2310
    %2482 = vmatpush.bf16.msra.mxu0 %v2306
    %2483 = vmatpush.bf16.msra.mxu0 %v2302
    %2484 = vmatpush.bf16.msra.mxu0 %v2298
    %2485 = vmatpush.bf16.msra.mxu0 %v2294
    %2486 = vmatpush.bf16.msra.mxu0 %v2290
    %2487 = vmatpush.bf16.msra.mxu0 %v2286
    %2488 = vmatpush.bf16.msra.mxu0 %v2282
    %2489 = vmatmul.bf16.gmra.mxu0 %v1663
    %v2490 = vpop.f32.mrf.mxu0
    %v2491 = vadd.f32 %v2478, %v2490
    %v2492 = vpop.f32.mrf.mxu0
    %2493 = vdwg.mxu0
    %2494 = vmatpush.bf16.msra.mxu0 %v2215
    %2495 = vmatpush.bf16.msra.mxu0 %v2211
    %2496 = vmatpush.bf16.msra.mxu0 %v2207
    %2497 = vmatpush.bf16.msra.mxu0 %v2203
    %2498 = vmatpush.bf16.msra.mxu0 %v2199
    %2499 = vmatpush.bf16.msra.mxu0 %v2195
    %2500 = vmatpush.bf16.msra.mxu0 %v2191
    %2501 = vmatpush.bf16.msra.mxu0 %v2187
    %2502 = vmatmul.bf16.gmra.mxu0 %v1660
    %v2503 = vpop.f32.mrf.mxu0
    %v2504 = vadd.f32 %v1795, %v2503
    %v2505 = vpop.f32.mrf.mxu0
    %2506 = vdwg.mxu0
    %2507 = vmatpush.bf16.msra.mxu0 %v2247
    %2508 = vmatpush.bf16.msra.mxu0 %v2243
    %2509 = vmatpush.bf16.msra.mxu0 %v2239
    %2510 = vmatpush.bf16.msra.mxu0 %v2235
    %2511 = vmatpush.bf16.msra.mxu0 %v2231
    %2512 = vmatpush.bf16.msra.mxu0 %v2227
    %2513 = vmatpush.bf16.msra.mxu0 %v2223
    %2514 = vmatpush.bf16.msra.mxu0 %v2219
    %2515 = vmatmul.bf16.gmra.mxu0 %v1661
    %v2516 = vpop.f32.mrf.mxu0
    %v2517 = vadd.f32 %v2504, %v2516
    %v2518 = vpop.f32.mrf.mxu0
    %2519 = vdwg.mxu0
    %2520 = vmatpush.bf16.msra.mxu0 %v2279
    %2521 = vmatpush.bf16.msra.mxu0 %v2275
    %2522 = vmatpush.bf16.msra.mxu0 %v2271
    %2523 = vmatpush.bf16.msra.mxu0 %v2267
    %2524 = vmatpush.bf16.msra.mxu0 %v2263
    %2525 = vmatpush.bf16.msra.mxu0 %v2259
    %2526 = vmatpush.bf16.msra.mxu0 %v2255
    %2527 = vmatpush.bf16.msra.mxu0 %v2251
    %2528 = vmatmul.bf16.gmra.mxu0 %v1662
    %v2529 = vpop.f32.mrf.mxu0
    %v2530 = vadd.f32 %v2517, %v2529
    %v2531 = vpop.f32.mrf.mxu0
    %2532 = vdwg.mxu0
    %2533 = vmatpush.bf16.msra.mxu0 %v2311
    %2534 = vmatpush.bf16.msra.mxu0 %v2307
    %2535 = vmatpush.bf16.msra.mxu0 %v2303
    %2536 = vmatpush.bf16.msra.mxu0 %v2299
    %2537 = vmatpush.bf16.msra.mxu0 %v2295
    %2538 = vmatpush.bf16.msra.mxu0 %v2291
    %2539 = vmatpush.bf16.msra.mxu0 %v2287
    %2540 = vmatpush.bf16.msra.mxu0 %v2283
    %2541 = vmatmul.bf16.gmra.mxu0 %v1663
    %v2542 = vpop.f32.mrf.mxu0
    %v2543 = vadd.f32 %v2530, %v2542
    %v2544 = vpop.f32.mrf.mxu0
    %2545 = vdwg.mxu0
    %2546 = vmatpush.bf16.msra.mxu0 %v2216
    %2547 = vmatpush.bf16.msra.mxu0 %v2212
    %2548 = vmatpush.bf16.msra.mxu0 %v2208
    %2549 = vmatpush.bf16.msra.mxu0 %v2204
    %2550 = vmatpush.bf16.msra.mxu0 %v2200
    %2551 = vmatpush.bf16.msra.mxu0 %v2196
    %2552 = vmatpush.bf16.msra.mxu0 %v2192
    %2553 = vmatpush.bf16.msra.mxu0 %v2188
    %2554 = vmatmul.bf16.gmra.mxu0 %v1660
    %v2555 = vpop.f32.mrf.mxu0
    %v2556 = vadd.f32 %v1796, %v2555
    %v2557 = vpop.f32.mrf.mxu0
    %2558 = vdwg.mxu0
    %2559 = vmatpush.bf16.msra.mxu0 %v2248
    %2560 = vmatpush.bf16.msra.mxu0 %v2244
    %2561 = vmatpush.bf16.msra.mxu0 %v2240
    %2562 = vmatpush.bf16.msra.mxu0 %v2236
    %2563 = vmatpush.bf16.msra.mxu0 %v2232
    %2564 = vmatpush.bf16.msra.mxu0 %v2228
    %2565 = vmatpush.bf16.msra.mxu0 %v2224
    %2566 = vmatpush.bf16.msra.mxu0 %v2220
    %2567 = vmatmul.bf16.gmra.mxu0 %v1661
    %v2568 = vpop.f32.mrf.mxu0
    %v2569 = vadd.f32 %v2556, %v2568
    %v2570 = vpop.f32.mrf.mxu0
    %2571 = vdwg.mxu0
    %2572 = vmatpush.bf16.msra.mxu0 %v2280
    %2573 = vmatpush.bf16.msra.mxu0 %v2276
    %2574 = vmatpush.bf16.msra.mxu0 %v2272
    %2575 = vmatpush.bf16.msra.mxu0 %v2268
    %2576 = vmatpush.bf16.msra.mxu0 %v2264
    %2577 = vmatpush.bf16.msra.mxu0 %v2260
    %2578 = vmatpush.bf16.msra.mxu0 %v2256
    %2579 = vmatpush.bf16.msra.mxu0 %v2252
    %2580 = vmatmul.bf16.gmra.mxu0 %v1662
    %v2581 = vpop.f32.mrf.mxu0
    %v2582 = vadd.f32 %v2569, %v2581
    %v2583 = vpop.f32.mrf.mxu0
    %2584 = vdwg.mxu0
    %2585 = vmatpush.bf16.msra.mxu0 %v2312
    %2586 = vmatpush.bf16.msra.mxu0 %v2308
    %2587 = vmatpush.bf16.msra.mxu0 %v2304
    %2588 = vmatpush.bf16.msra.mxu0 %v2300
    %2589 = vmatpush.bf16.msra.mxu0 %v2296
    %2590 = vmatpush.bf16.msra.mxu0 %v2292
    %2591 = vmatpush.bf16.msra.mxu0 %v2288
    %2592 = vmatpush.bf16.msra.mxu0 %v2284
    %2593 = vmatmul.bf16.gmra.mxu0 %v1663
    %v2594 = vpop.f32.mrf.mxu0
    %v2595 = vadd.f32 %v2582, %v2594
    %v2596 = vpop.f32.mrf.mxu0
    %2597 = vdwg.mxu0
    %2598 = vmatpush.bf16.msra.mxu0 %v2217
    %2599 = vmatpush.bf16.msra.mxu0 %v2213
    %2600 = vmatpush.bf16.msra.mxu0 %v2209
    %2601 = vmatpush.bf16.msra.mxu0 %v2205
    %2602 = vmatpush.bf16.msra.mxu0 %v2201
    %2603 = vmatpush.bf16.msra.mxu0 %v2197
    %2604 = vmatpush.bf16.msra.mxu0 %v2193
    %2605 = vmatpush.bf16.msra.mxu0 %v2189
    %2606 = vmatmul.bf16.gmra.mxu0 %v1660
    %v2607 = vpop.f32.mrf.mxu0
    %v2608 = vadd.f32 %v1797, %v2607
    %v2609 = vpop.f32.mrf.mxu0
    %2610 = vdwg.mxu0
    %2611 = vmatpush.bf16.msra.mxu0 %v2249
    %2612 = vmatpush.bf16.msra.mxu0 %v2245
    %2613 = vmatpush.bf16.msra.mxu0 %v2241
    %2614 = vmatpush.bf16.msra.mxu0 %v2237
    %2615 = vmatpush.bf16.msra.mxu0 %v2233
    %2616 = vmatpush.bf16.msra.mxu0 %v2229
    %2617 = vmatpush.bf16.msra.mxu0 %v2225
    %2618 = vmatpush.bf16.msra.mxu0 %v2221
    %2619 = vmatmul.bf16.gmra.mxu0 %v1661
    %v2620 = vpop.f32.mrf.mxu0
    %v2621 = vadd.f32 %v2608, %v2620
    %v2622 = vpop.f32.mrf.mxu0
    %2623 = vdwg.mxu0
    %2624 = vmatpush.bf16.msra.mxu0 %v2281
    %2625 = vmatpush.bf16.msra.mxu0 %v2277
    %2626 = vmatpush.bf16.msra.mxu0 %v2273
    %2627 = vmatpush.bf16.msra.mxu0 %v2269
    %2628 = vmatpush.bf16.msra.mxu0 %v2265
    %2629 = vmatpush.bf16.msra.mxu0 %v2261
    %2630 = vmatpush.bf16.msra.mxu0 %v2257
    %2631 = vmatpush.bf16.msra.mxu0 %v2253
    %2632 = vmatmul.bf16.gmra.mxu0 %v1662
    %v2633 = vpop.f32.mrf.mxu0
    %v2634 = vadd.f32 %v2621, %v2633
    %v2635 = vpop.f32.mrf.mxu0
    %2636 = vdwg.mxu0
    %2637 = vmatpush.bf16.msra.mxu0 %v2313
    %2638 = vmatpush.bf16.msra.mxu0 %v2309
    %2639 = vmatpush.bf16.msra.mxu0 %v2305
    %2640 = vmatpush.bf16.msra.mxu0 %v2301
    %2641 = vmatpush.bf16.msra.mxu0 %v2297
    %2642 = vmatpush.bf16.msra.mxu0 %v2293
    %2643 = vmatpush.bf16.msra.mxu0 %v2289
    %2644 = vmatpush.bf16.msra.mxu0 %v2285
    %2645 = vmatmul.bf16.gmra.mxu0 %v1663
    %v2646 = vpop.f32.mrf.mxu0
    %v2647 = vadd.f32 %v2634, %v2646
    %v2648 = vpop.f32.mrf.mxu0
    %2649 = vdwg.mxu0
    %v2650 = vmax.f32 %v2491, 0.0
    %v2651 = vmax.f32 %v2543, 0.0
    %v2652 = vmax.f32 %v2595, 0.0
    %v2653 = vmax.f32 %v2647, 0.0
    %v2654 = vpack.c.bf16 %v2650, %v2650
    %v2655 = vpack.c.bf16 %v2651, %v2651
    %v2656 = vpack.c.bf16 %v2652, %v2652
    %v2657 = vpack.c.bf16 %v2653, %v2653
    %v2658 = vld [vmem:[#allocation6] sm:$0xf]
    %v2659 = vld [vmem:[#allocation6 + $0x4] sm:$0xf]
    %v2660 = vld [vmem:[#allocation6 + $0x8] sm:$0xf]
    %v2661 = vld [vmem:[#allocation6 + $0xc] sm:$0xf]
    %v2662 = vld [vmem:[#allocation6 + $0x10] sm:$0xf]
    %v2663 = vld [vmem:[#allocation6 + $0x14] sm:$0xf]
    %v2664 = vld [vmem:[#allocation6 + $0x18] sm:$0xf]
    %v2665 = vld [vmem:[#allocation6 + $0x1c] sm:$0xf]
    %v2666 = vld [vmem:[#allocation6 + $0x20] sm:$0xf]
    %v2667 = vld [vmem:[#allocation6 + $0x24] sm:$0xf]
    %v2668 = vld [vmem:[#allocation6 + $0x28] sm:$0xf]
    %v2669 = vld [vmem:[#allocation6 + $0x2c] sm:$0xf]
    %v2670 = vld [vmem:[#allocation6 + $0x30] sm:$0xf]
    %v2671 = vld [vmem:[#allocation6 + $0x34] sm:$0xf]
    %v2672 = vld [vmem:[#allocation6 + $0x38] sm:$0xf]
    %v2673 = vld [vmem:[#allocation6 + $0x3c] sm:$0xf]
    %v2674 = vld [vmem:[#allocation6 + $0x40] sm:$0xf]
    %v2675 = vld [vmem:[#allocation6 + $0x44] sm:$0xf]
    %v2676 = vld [vmem:[#allocation6 + $0x48] sm:$0xf]
    %v2677 = vld [vmem:[#allocation6 + $0x4c] sm:$0xf]
    %v2678 = vld [vmem:[#allocation6 + $0x50] sm:$0xf]
    %v2679 = vld [vmem:[#allocation6 + $0x54] sm:$0xf]
    %v2680 = vld [vmem:[#allocation6 + $0x58] sm:$0xf]
    %v2681 = vld [vmem:[#allocation6 + $0x5c] sm:$0xf]
    %v2682 = vld [vmem:[#allocation6 + $0x60] sm:$0xf]
    %v2683 = vld [vmem:[#allocation6 + $0x64] sm:$0xf]
    %v2684 = vld [vmem:[#allocation6 + $0x68] sm:$0xf]
    %v2685 = vld [vmem:[#allocation6 + $0x6c] sm:$0xf]
    %v2686 = vld [vmem:[#allocation6 + $0x70] sm:$0xf]
    %v2687 = vld [vmem:[#allocation6 + $0x74] sm:$0xf]
    %v2688 = vld [vmem:[#allocation6 + $0x78] sm:$0xf]
    %v2689 = vld [vmem:[#allocation6 + $0x7c] sm:$0xf]
    %v2690 = vld [vmem:[#allocation6 + $0x80] sm:$0xf]
    %v2691 = vld [vmem:[#allocation6 + $0x84] sm:$0xf]
    %v2692 = vld [vmem:[#allocation6 + $0x88] sm:$0xf]
    %v2693 = vld [vmem:[#allocation6 + $0x8c] sm:$0xf]
    %v2694 = vld [vmem:[#allocation6 + $0x90] sm:$0xf]
    %v2695 = vld [vmem:[#allocation6 + $0x94] sm:$0xf]
    %v2696 = vld [vmem:[#allocation6 + $0x98] sm:$0xf]
    %v2697 = vld [vmem:[#allocation6 + $0x9c] sm:$0xf]
    %v2698 = vld [vmem:[#allocation6 + $0xa0] sm:$0xf]
    %v2699 = vld [vmem:[#allocation6 + $0xa4] sm:$0xf]
    %v2700 = vld [vmem:[#allocation6 + $0xa8] sm:$0xf]
    %v2701 = vld [vmem:[#allocation6 + $0xac] sm:$0xf]
    %v2702 = vld [vmem:[#allocation6 + $0xb0] sm:$0xf]
    %v2703 = vld [vmem:[#allocation6 + $0xb4] sm:$0xf]
    %v2704 = vld [vmem:[#allocation6 + $0xb8] sm:$0xf]
    %v2705 = vld [vmem:[#allocation6 + $0xbc] sm:$0xf]
    %v2706 = vld [vmem:[#allocation6 + $0xc0] sm:$0xf]
    %v2707 = vld [vmem:[#allocation6 + $0xc4] sm:$0xf]
    %v2708 = vld [vmem:[#allocation6 + $0xc8] sm:$0xf]
    %v2709 = vld [vmem:[#allocation6 + $0xcc] sm:$0xf]
    %v2710 = vld [vmem:[#allocation6 + $0xd0] sm:$0xf]
    %v2711 = vld [vmem:[#allocation6 + $0xd4] sm:$0xf]
    %v2712 = vld [vmem:[#allocation6 + $0xd8] sm:$0xf]
    %v2713 = vld [vmem:[#allocation6 + $0xdc] sm:$0xf]
    %v2714 = vld [vmem:[#allocation6 + $0xe0] sm:$0xf]
    %v2715 = vld [vmem:[#allocation6 + $0xe4] sm:$0xf]
    %v2716 = vld [vmem:[#allocation6 + $0xe8] sm:$0xf]
    %v2717 = vld [vmem:[#allocation6 + $0xec] sm:$0xf]
    %v2718 = vld [vmem:[#allocation6 + $0xf0] sm:$0xf]
    %v2719 = vld [vmem:[#allocation6 + $0xf4] sm:$0xf]
    %v2720 = vld [vmem:[#allocation6 + $0xf8] sm:$0xf]
    %v2721 = vld [vmem:[#allocation6 + $0xfc] sm:$0xf]
    %v2722 = vld [vmem:[%s6] sm:$0x1]
    %v2724 = vperm.slane %v2722, 0
    %v2790 = vunpack.c.l.b16 %v2658
    %v2791 = vunpack.c.l.b16 %v2659
    %v2792 = vunpack.c.l.b16 %v2660
    %v2793 = vunpack.c.l.b16 %v2661
    %v2794 = vunpack.c.l.b16 %v2662
    %v2795 = vunpack.c.l.b16 %v2663
    %v2796 = vunpack.c.l.b16 %v2664
    %v2797 = vunpack.c.l.b16 %v2665
    %v2798 = vunpack.c.l.b16 %v2666
    %v2799 = vunpack.c.l.b16 %v2667
    %v2800 = vunpack.c.l.b16 %v2668
    %v2801 = vunpack.c.l.b16 %v2669
    %v2802 = vunpack.c.l.b16 %v2670
    %v2803 = vunpack.c.l.b16 %v2671
    %v2804 = vunpack.c.l.b16 %v2672
    %v2805 = vunpack.c.l.b16 %v2673
    %v2806 = vunpack.c.l.b16 %v2674
    %v2807 = vunpack.c.l.b16 %v2675
    %v2808 = vunpack.c.l.b16 %v2676
    %v2809 = vunpack.c.l.b16 %v2677
    %v2810 = vunpack.c.l.b16 %v2678
    %v2811 = vunpack.c.l.b16 %v2679
    %v2812 = vunpack.c.l.b16 %v2680
    %v2813 = vunpack.c.l.b16 %v2681
    %v2814 = vunpack.c.l.b16 %v2682
    %v2815 = vunpack.c.l.b16 %v2683
    %v2816 = vunpack.c.l.b16 %v2684
    %v2817 = vunpack.c.l.b16 %v2685
    %v2818 = vunpack.c.l.b16 %v2686
    %v2819 = vunpack.c.l.b16 %v2687
    %v2820 = vunpack.c.l.b16 %v2688
    %v2821 = vunpack.c.l.b16 %v2689
    %v2822 = vunpack.c.l.b16 %v2690
    %v2823 = vunpack.c.l.b16 %v2691
    %v2824 = vunpack.c.l.b16 %v2692
    %v2825 = vunpack.c.l.b16 %v2693
    %v2826 = vunpack.c.l.b16 %v2694
    %v2827 = vunpack.c.l.b16 %v2695
    %v2828 = vunpack.c.l.b16 %v2696
    %v2829 = vunpack.c.l.b16 %v2697
    %v2830 = vunpack.c.l.b16 %v2698
    %v2831 = vunpack.c.l.b16 %v2699
    %v2832 = vunpack.c.l.b16 %v2700
    %v2833 = vunpack.c.l.b16 %v2701
    %v2834 = vunpack.c.l.b16 %v2702
    %v2835 = vunpack.c.l.b16 %v2703
    %v2836 = vunpack.c.l.b16 %v2704
    %v2837 = vunpack.c.l.b16 %v2705
    %v2838 = vunpack.c.l.b16 %v2706
    %v2839 = vunpack.c.l.b16 %v2707
    %v2840 = vunpack.c.l.b16 %v2708
    %v2841 = vunpack.c.l.b16 %v2709
    %v2842 = vunpack.c.l.b16 %v2710
    %v2843 = vunpack.c.l.b16 %v2711
    %v2844 = vunpack.c.l.b16 %v2712
    %v2845 = vunpack.c.l.b16 %v2713
    %v2846 = vunpack.c.l.b16 %v2714
    %v2847 = vunpack.c.l.b16 %v2715
    %v2848 = vunpack.c.l.b16 %v2716
    %v2849 = vunpack.c.l.b16 %v2717
    %v2850 = vunpack.c.l.b16 %v2718
    %v2851 = vunpack.c.l.b16 %v2719
    %v2852 = vunpack.c.l.b16 %v2720
    %v2853 = vunpack.c.l.b16 %v2721
    %v2854 = vpack.c.b16 %v2791, %v2790
    %v2855 = vpack.c.b16 %v2793, %v2792
    %v2856 = vpack.c.b16 %v2795, %v2794
    %v2857 = vpack.c.b16 %v2797, %v2796
    %v2858 = vpack.c.b16 %v2799, %v2798
    %v2859 = vpack.c.b16 %v2801, %v2800
    %v2860 = vpack.c.b16 %v2803, %v2802
    %v2861 = vpack.c.b16 %v2805, %v2804
    %v2862 = vpack.c.b16 %v2807, %v2806
    %v2863 = vpack.c.b16 %v2809, %v2808
    %v2864 = vpack.c.b16 %v2811, %v2810
    %v2865 = vpack.c.b16 %v2813, %v2812
    %v2866 = vpack.c.b16 %v2815, %v2814
    %v2867 = vpack.c.b16 %v2817, %v2816
    %v2868 = vpack.c.b16 %v2819, %v2818
    %v2869 = vpack.c.b16 %v2821, %v2820
    %v2870 = vpack.c.b16 %v2823, %v2822
    %v2871 = vpack.c.b16 %v2825, %v2824
    %v2872 = vpack.c.b16 %v2827, %v2826
    %v2873 = vpack.c.b16 %v2829, %v2828
    %v2874 = vpack.c.b16 %v2831, %v2830
    %v2875 = vpack.c.b16 %v2833, %v2832
    %v2876 = vpack.c.b16 %v2835, %v2834
    %v2877 = vpack.c.b16 %v2837, %v2836
    %v2878 = vpack.c.b16 %v2839, %v2838
    %v2879 = vpack.c.b16 %v2841, %v2840
    %v2880 = vpack.c.b16 %v2843, %v2842
    %v2881 = vpack.c.b16 %v2845, %v2844
    %v2882 = vpack.c.b16 %v2847, %v2846
    %v2883 = vpack.c.b16 %v2849, %v2848
    %v2884 = vpack.c.b16 %v2851, %v2850
    %v2885 = vpack.c.b16 %v2853, %v2852
    %2918 = vmatpush.bf16.msra.mxu0 %v2861
    %2919 = vmatpush.bf16.msra.mxu0 %v2860
    %2920 = vmatpush.bf16.msra.mxu0 %v2859
    %2921 = vmatpush.bf16.msra.mxu0 %v2858
    %2922 = vmatpush.bf16.msra.mxu0 %v2857
    %2923 = vmatpush.bf16.msra.mxu0 %v2856
    %2924 = vmatpush.bf16.msra.mxu0 %v2855
    %2925 = vmatpush.bf16.msra.mxu0 %v2854
    %2926 = vmatmul.bf16.gmra.mxu0 %v2654
    %v2927 = vpop.f32.mrf.mxu0
    %v2928 = vadd.f32 %v2724, %v2927
    %v2929 = vpop.f32.mrf.mxu0
    %2930 = vdwg.mxu0
    %2931 = vmatpush.bf16.msra.mxu0 %v2869
    %2932 = vmatpush.bf16.msra.mxu0 %v2868
    %2933 = vmatpush.bf16.msra.mxu0 %v2867
    %2934 = vmatpush.bf16.msra.mxu0 %v2866
    %2935 = vmatpush.bf16.msra.mxu0 %v2865
    %2936 = vmatpush.bf16.msra.mxu0 %v2864
    %2937 = vmatpush.bf16.msra.mxu0 %v2863
    %2938 = vmatpush.bf16.msra.mxu0 %v2862
    %2939 = vmatmul.bf16.gmra.mxu0 %v2655
    %v2940 = vpop.f32.mrf.mxu0
    %v2941 = vadd.f32 %v2928, %v2940
    %v2942 = vpop.f32.mrf.mxu0
    %2943 = vdwg.mxu0
    %2944 = vmatpush.bf16.msra.mxu0 %v2877
    %2945 = vmatpush.bf16.msra.mxu0 %v2876
    %2946 = vmatpush.bf16.msra.mxu0 %v2875
    %2947 = vmatpush.bf16.msra.mxu0 %v2874
    %2948 = vmatpush.bf16.msra.mxu0 %v2873
    %2949 = vmatpush.bf16.msra.mxu0 %v2872
    %2950 = vmatpush.bf16.msra.mxu0 %v2871
    %2951 = vmatpush.bf16.msra.mxu0 %v2870
    %2952 = vmatmul.bf16.gmra.mxu0 %v2656
    %v2953 = vpop.f32.mrf.mxu0
    %v2954 = vadd.f32 %v2941, %v2953
    %v2955 = vpop.f32.mrf.mxu0
    %2956 = vdwg.mxu0
    %2957 = vmatpush.bf16.msra.mxu0 %v2885
    %2958 = vmatpush.bf16.msra.mxu0 %v2884
    %2959 = vmatpush.bf16.msra.mxu0 %v2883
    %2960 = vmatpush.bf16.msra.mxu0 %v2882
    %2961 = vmatpush.bf16.msra.mxu0 %v2881
    %2962 = vmatpush.bf16.msra.mxu0 %v2880
    %2963 = vmatpush.bf16.msra.mxu0 %v2879
    %2964 = vmatpush.bf16.msra.mxu0 %v2878
    %2965 = vmatmul.bf16.gmra.mxu0 %v2657
    %v2966 = vpop.f32.mrf.mxu0
    %v2967 = vadd.f32 %v2954, %v2966
    %v2968 = vpop.f32.mrf.mxu0
    %2969 = vdwg.mxu0
    %v2970 = vpack.c.bf16 %v2967, %v2967
    %2971 = vst [vmem:[%s7] sm:$0xf] %v2970
    // Predicated region
    $region42: #{neural_network_forward.1} parent=1 // pred_check
      _
    $region43: #{neural_network_forward.1} parent=1 // pred_check_branch
      %2973 = sbr.rel (0) target = $region45
    $region44: #{neural_network_forward.1} parent=1 // pred_region
      _
    $region45: #{neural_network_forward.1} parent=1 // pred_fallthru
      _
    // Predicated region
    $region46: #{neural_network_forward.1} parent=1 // pred_check
      _
    $region47: #{neural_network_forward.1} parent=1 // pred_check_branch
      %2975 = sbr.rel (0) target = $region49
    $region48: #{neural_network_forward.1} parent=1 // pred_region
      _
    $region49: #{neural_network_forward.1} parent=1 // pred_fallthru
      _
    %2976 = vsyncpa [#allocation3], 1
    %2977 = vsyncpa [#allocation5], 1

</llo_original>
